<compile_context>
chip_gen: v5e
topology: v5e:2x2
jax: 0.10.0
libtpu: 0.0.40
codegen_flags: <defaults>
</compile_context>

<pallas_src>
import functools

import jax
import jax.numpy as jnp
from jax.experimental import pallas as pl
from jax.experimental.pallas import tpu as pltpu


# ----------------------------------------------------------------------------
# Kernel-side helpers
# ----------------------------------------------------------------------------
def _mm(a, w):
    # MXU matmul: cast LHS to the weight dtype (bf16 when enabled), accumulate in f32.
    return jnp.dot(a.astype(w.dtype), w, preferred_element_type=jnp.float32)


def _gates_to_hc(gates, c, hidden):
    # PyTorch gate order: i, f, g, o.  gates: (B, 4H) float32.
    # NOTE: per-gate lane slices are sub-vreg extracts; for production shapes prefer
    # hidden a multiple of 128 so each gate is lane-aligned.
    i = jax.nn.sigmoid(gates[:, 0 * hidden:1 * hidden])
    f = jax.nn.sigmoid(gates[:, 1 * hidden:2 * hidden])
    g = jnp.tanh(gates[:, 2 * hidden:3 * hidden])
    o = jax.nn.sigmoid(gates[:, 3 * hidden:4 * hidden])
    c_new = f * c + i * g
    h_new = o * jnp.tanh(c_new)
    return h_new, c_new


def _upper_layers(inp, h, c, w_fused, b_bcast, n_layers, hidden):
    # Layers 1..L-1: one fused [input, h_l] @ [W_ih; W_hh] matmul per cell.
    for l in range(1, n_layers):
        gates = _mm(jnp.concatenate([inp, h[l]], axis=-1), w_fused[l - 1]) + b_bcast[l - 1]
        h[l], c[l] = _gates_to_hc(gates, c[l], hidden)
        inp = h[l]
    # TODO(synk): nn.LSTM inter-layer dropout is stochastic; this kernel assumes dropout=0.0.


# ----------------------------------------------------------------------------
# Kernel
# ----------------------------------------------------------------------------
def _detector_kernel(n_layers, hidden, seq_len, training, *refs):
    L, H, S = n_layers, hidden, seq_len
    G = 4 * H
    n_enc_refs = 3 + 2 * (L - 1)                      # [wih0_t, whh0_t, b0] + [wfused_l, b_l]*
    n_dec_refs = (3 if training else 2) + 2 * (L - 1)  # eval: layer 0 is [w0_fused, b0_fused]

    idx = 0
    x_ref = refs[idx]; idx += 1
    enc_refs = refs[idx:idx + n_enc_refs]; idx += n_enc_refs
    dec_refs = refs[idx:idx + n_dec_refs]; idx += n_dec_refs
    out_w_ref = refs[idx]; idx += 1
    out_b_ref = refs[idx]; idx += 1
    out_ref = refs[idx]; idx += 1
    xg_enc_ref = refs[idx]; idx += 1          # (S, B, 4H) precomputed encoder layer-0 gates
    if training:
        xg_dec_ref = refs[idx]; idx += 1      # (S, B, 4H) precomputed decoder layer-0 gates
    hdec_ref = refs[idx]; idx += 1            # (S, B, H)  decoder layer-0 hidden history

    B = x_ref.shape[1]
    F = x_ref.shape[2]

    # ---- hoisted layer-0 input projections: one big MXU-friendly matmul each ----
    x_flat = x_ref[...].reshape(S * B, F)
    xw = x_flat.astype(enc_refs[0].dtype)     # cast once; reused by encoder + (train) decoder
    xg_enc_ref[...] = (
        jnp.dot(xw, enc_refs[0][...], preferred_element_type=jnp.float32)
        + enc_refs[2][...]
    ).reshape(S, B, G)
    if training:
        # Teacher forcing: decoder layer-0 inputs are the (known) raw sequence.
        xg_dec_ref[...] = (
            jnp.dot(xw, dec_refs[0][...], preferred_element_type=jnp.float32)
            + dec_refs[2][...]
        ).reshape(S, B, G)

    # ---- encoder ----
    # Only encoder weights are pulled out of VMEM here; decoder weights are read
    # after the encoder loop so they are not live (and don't pin vregs) during it.
    enc_whh0 = enc_refs[1][...]
    enc_wf = [enc_refs[3 + 2 * (l - 1)][...] for l in range(1, L)]
    enc_bb = [pl.broadcast_to(enc_refs[4 + 2 * (l - 1)][...], (B, G)) for l in range(1, L)]

    h = [jnp.zeros((B, H), jnp.float32) for _ in range(L)]
    c = [jnp.zeros((B, H), jnp.float32) for _ in range(L)]

    # Time loop fully unrolled (S is a compile-time constant) -> static slices and
    # cross-step scheduling visibility.  For long sequences switch to
    # lax.fori_loop(..., unroll=k) with the precomputed-gates scratch indexed by pl.ds.
    for t in range(S):
        gates0 = xg_enc_ref[t] + _mm(h[0], enc_whh0)
        h[0], c[0] = _gates_to_hc(gates0, c[0], H)
        _upper_layers(h[0], h, c, enc_wf, enc_bb, L, H)

    # ---- decoder (reverse time), state handed off from the encoder ----
    base = 3 if training else 2
    dec_wf = [dec_refs[base + 2 * (l - 1)][...] for l in range(1, L)]
    dec_bb = [pl.broadcast_to(dec_refs[base + 1 + 2 * (l - 1)][...], (B, G)) for l in range(1, L)]
    if training:
        dec_whh0 = dec_refs[1][...]
    else:
        # Eval mode: output-projection + layer-0 input projection already folded into
        # one (H, 4H) weight in the wrapper -> single matmul per step.
        dec_w0 = dec_refs[0][...]
        dec_b0_bcast = pl.broadcast_to(dec_refs[1][...], (B, G))

    for t in range(S - 1, -1, -1):
        # Record the pre-update layer-0 hidden state; it is projected to output[t]
        # after the loop (one batched matmul + one slab store instead of S tiny ones).
        hdec_ref[t] = h[0]
        if training:
            gates0 = xg_dec_ref[t] + _mm(h[0], dec_whh0)
        else:
            gates0 = _mm(h[0], dec_w0) + dec_b0_bcast
        h[0], c[0] = _gates_to_hc(gates0, c[0], H)
        _upper_layers(h[0], h, c, dec_wf, dec_bb, L, H)

    # ---- batched output projection + single full-slab store ----
    out_w = out_w_ref[...]
    out_b = out_b_ref[...]
    out_all = _mm(hdec_ref[...].reshape(S * B, H), out_w) + out_b   # (S*B, F) f32
    out_ref[...] = out_all.reshape(S, B, F)


# ----------------------------------------------------------------------------
# Wrapper (layout transposes, weight packing/fusion, pallas_call plumbing)
# ----------------------------------------------------------------------------
def detector_forward(ts_batch, params, training=True, use_bf16=True):
    """ts_batch: (B, S, F) float32, batch-first like the PyTorch module."""
    ts_batch = ts_batch.astype(jnp.float32)
    B, S, F = ts_batch.shape
    L = params["n_layers"]
    H = params["hidden_size"]
    wdt = jnp.bfloat16 if use_bf16 else jnp.float32   # MXU weight dtype (bf16-native on v6e/v7x)

    x_tm = jnp.transpose(ts_batch, (1, 0, 2))          # time-major (S, B, F)

    out_w_t = jnp.transpose(params["w_out"]).astype(jnp.float32)   # (H, F)
    out_b_row = params["b_out"].reshape(1, F).astype(jnp.float32)  # (1, F)

    def lstm_args(which, fuse_layer0_with_output):
        out = []
        for l in range(L):
            p = params[which][l]
            wih_t = jnp.transpose(p["w_ih"]).astype(jnp.float32)   # (in, 4H)
            whh_t = jnp.transpose(p["w_hh"]).astype(jnp.float32)   # (H, 4H)
            b = p["b"].reshape(1, 4 * H).astype(jnp.float32)
            if l == 0:
                if fuse_layer0_with_output:
                    # Fold hidden2output + decoder W_ih into the recurrent weight (f32,
                    # cast once): gates0 = h @ (Wout^T Wih^T + Whh^T) + (b_out Wih^T + b).
                    w0 = (out_w_t @ wih_t + whh_t).astype(wdt)      # (H, 4H)
                    b0 = out_b_row @ wih_t + b                      # (1, 4H) f32
                    out += [w0, b0]
                else:
                    out += [wih_t.astype(wdt), whh_t.astype(wdt), b]   # layer 0, proj hoisted
            else:
                out += [jnp.concatenate([wih_t, whh_t], axis=0).astype(wdt), b]  # fused (2H,4H)
        return out

    args = [x_tm] + lstm_args("enc", False) + lstm_args("dec", not training)
    args.append(out_w_t.astype(wdt))         # (H, F)
    args.append(out_b_row)                   # (1, F)

    kernel = functools.partial(_detector_kernel, L, H, S, bool(training))
    vmem_spec = pl.BlockSpec(memory_space=pltpu.MemorySpace.VMEM)

    scratch = [pltpu.VMEM((S, B, 4 * H), jnp.float32)]   # encoder layer-0 precomputed gates
    if training:
        scratch.append(pltpu.VMEM((S, B, 4 * H), jnp.float32))   # decoder layer-0 gates
    scratch.append(pltpu.VMEM((S, B, H), jnp.float32))           # decoder layer-0 hidden history

    # Small shapes: everything fits in VMEM in one invocation.  For large batches add a
    # batch grid axis with dimension_semantics=("parallel",) (2 TensorCores on v7x); for
    # long sequences tile the time axis with BlockSpecs (v7x has only 64 MiB VMEM).
    out_tm = pl.pallas_call(
        kernel,
        out_shape=jax.ShapeDtypeStruct((S, B, F), jnp.float32),
        in_specs=[vmem_spec] * len(args),
        out_specs=vmem_spec,
        scratch_shapes=scratch,
    )(*args)

    return jnp.transpose(out_tm, (1, 0, 2))  # back to (B, S, F)


# ----------------------------------------------------------------------------
# Deterministic parameter init (shapes match nn.LSTM / nn.Linear in __init__)
# ----------------------------------------------------------------------------
def init_params(key, n_features, hidden_size, n_layers, use_bias=True, dropout=0.0):
    del dropout  # deterministic kernel assumes dropout=0.0
    k = 1.0 / (hidden_size ** 0.5)
    n_keys = 2 * n_layers * 4 + 2
    keys = iter(jax.random.split(key, n_keys))

    def u(kk, shape):
        return jax.random.uniform(kk, shape, jnp.float32, minval=-k, maxval=k)

    def make_lstm():
        layers = []
        for l in range(n_layers):
            in_dim = n_features if l == 0 else hidden_size
            w_ih = u(next(keys), (4 * hidden_size, in_dim))
            w_hh = u(next(keys), (4 * hidden_size, hidden_size))
            if use_bias:
                b = u(next(keys), (4 * hidden_size,)) + u(next(keys), (4 * hidden_size,))
            else:
                _ = next(keys); _ = next(keys)
                b = jnp.zeros((4 * hidden_size,), jnp.float32)
            layers.append({"w_ih": w_ih, "w_hh": w_hh, "b": b})
        return layers

    enc = make_lstm()
    dec = make_lstm()
    w_out = u(next(keys), (n_features, hidden_size))
    b_out = u(next(keys), (n_features,)) if use_bias else jnp.zeros((n_features,), jnp.float32)
    return {"n_layers": n_layers, "hidden_size": hidden_size,
            "enc": enc, "dec": dec, "w_out": w_out, "b_out": b_out}


# ----------------------------------------------------------------------------
# Pure-JAX reference (mirrors the PyTorch forward exactly) for verification
# ----------------------------------------------------------------------------
def reference_forward(ts_batch, params, training=True):
    x = ts_batch.astype(jnp.float32)
    B, S, F = x.shape
    L = params["n_layers"]
    H = params["hidden_size"]

    def cell(x_t, h, c, p):
        g = x_t @ p["w_ih"].T + h @ p["w_hh"].T + p["b"]
        i = jax.nn.sigmoid(g[:, :H]); f = jax.nn.sigmoid(g[:, H:2 * H])
        gg = jnp.tanh(g[:, 2 * H:3 * H]); o = jax.nn.sigmoid(g[:, 3 * H:4 * H])
        c2 = f * c + i * gg
        return o * jnp.tanh(c2), c2

    def stacked(x_t, hs, cs, layers):
        inp = x_t
        nh, nc = [], []
        for l in range(L):
            h2, c2 = cell(inp, hs[l], cs[l], layers[l])
            nh.append(h2); nc.append(c2); inp = h2
        return nh, nc

    hs = [jnp.zeros((B, H), jnp.float32) for _ in range(L)]
    cs = [jnp.zeros((B, H), jnp.float32) for _ in range(L)]
    for t in range(S):
        hs, cs = stacked(x[:, t], hs, cs, params["enc"])

    out = jnp.zeros((B, S, F), jnp.float32)
    for i in reversed(range(S)):
        o_t = hs[0] @ params["w_out"].T + params["b_out"]
        out = out.at[:, i, :].set(o_t)
        dec_in = x[:, i] if training else o_t
        hs, cs = stacked(dec_in, hs, cs, params["dec"])
    return out


if __name__ == "__main__":
    # Small shapes consistent with the module: batch=2, seq=8, n_features=8, hidden=32, n_layers=2
    n_features, hidden_size, n_layers, use_bias, dropout = 8, 32, 2, True, 0.0
    batch, seq = 2, 8

    key = jax.random.PRNGKey(0)
    k_x, k_p = jax.random.split(key)
    ts_batch = jax.random.normal(k_x, (batch, seq, n_features), dtype=jnp.float32)
    params = init_params(k_p, n_features, hidden_size, n_layers, use_bias, dropout)

    for training in (True, False):   # True == fresh nn.Module default (self.training)
        ref = jax.block_until_ready(reference_forward(ts_batch, params, training=training))

        # f32 weight path: structural equivalence with the PyTorch-style reference.
        out_f32 = jax.block_until_ready(
            detector_forward(ts_batch, params, training=training, use_bf16=False))
        assert out_f32.shape == (batch, seq, n_features)
        if not bool(jnp.allclose(out_f32, ref, atol=1e-2, rtol=1e-2)):
            raise AssertionError(
                f"f32 mismatch (training={training}): "
                f"max abs err = {float(jnp.max(jnp.abs(out_f32 - ref)))}")

        # bf16 MXU weight path (v6e/v7x-friendly): f32 accumulation and activations,
        # slightly looser tolerance for the bf16 operand rounding.
        out_bf16 = jax.block_until_ready(
            detector_forward(ts_batch, params, training=training, use_bf16=True))
        if not bool(jnp.allclose(out_bf16, ref, atol=2e-2, rtol=2e-2)):
            raise AssertionError(
                f"bf16 mismatch (training={training}): "
                f"max abs err = {float(jnp.max(jnp.abs(out_bf16 - ref)))}")

    print("KERNEL_OK")
</pallas_src>

<mosaic_0001>
module attributes {stable_mosaic.version = 11 : i64} {
  func.func @_detector_kernel(%arg0: memref<8x2x8xf32, #tpu.memory_space<vmem>>, %arg1: memref<8x128xf32, #tpu.memory_space<vmem>>, %arg2: memref<32x128xf32, #tpu.memory_space<vmem>>, %arg3: memref<1x128xf32, #tpu.memory_space<vmem>>, %arg4: memref<64x128xf32, #tpu.memory_space<vmem>>, %arg5: memref<1x128xf32, #tpu.memory_space<vmem>>, %arg6: memref<8x128xf32, #tpu.memory_space<vmem>>, %arg7: memref<32x128xf32, #tpu.memory_space<vmem>>, %arg8: memref<1x128xf32, #tpu.memory_space<vmem>>, %arg9: memref<64x128xf32, #tpu.memory_space<vmem>>, %arg10: memref<1x128xf32, #tpu.memory_space<vmem>>, %arg11: memref<32x8xf32, #tpu.memory_space<vmem>>, %arg12: memref<1x8xf32, #tpu.memory_space<vmem>>, %arg13: memref<8x2x8xf32, #tpu.memory_space<vmem>>, %arg14: memref<8x2x128xf32, #tpu.memory_space<vmem>>, %arg15: memref<8x2x128xf32, #tpu.memory_space<vmem>>, %arg16: memref<8x2x32xf32, #tpu.memory_space<vmem>>) attributes {dimension_semantics = [], scalar_prefetch = 0 : i64, scratch_operands = 3 : i64, tpu.core_type = #tpu.core_type<tc>} {
    %c0 = arith.constant 0 : index
    %c0_0 = arith.constant 0 : index
    %c0_1 = arith.constant 0 : index
    %0 = vector.load %arg0[%c0, %c0_0, %c0_1] : memref<8x2x8xf32, #tpu.memory_space<vmem>>, vector<8x2x8xf32>
    %1 = vector.shape_cast %0 : vector<8x2x8xf32> to vector<16x8xf32>
    %c0_2 = arith.constant 0 : index
    %c0_3 = arith.constant 0 : index
    %2 = vector.load %arg1[%c0_2, %c0_3] : memref<8x128xf32, #tpu.memory_space<vmem>>, vector<8x128xf32>
    %cst = arith.constant dense<0.000000e+00> : vector<16x128xf32>
    %3 = tpu.matmul %1, %2, %cst {dimension_numbers = #tpu.dot_dimension_numbers<[1], [0], [0], [1], [0, 0, 1, 1], [], []>} : vector<16x8xf32>, vector<8x128xf32>, vector<16x128xf32> -> vector<16x128xf32>
    %c0_4 = arith.constant 0 : index
    %c0_5 = arith.constant 0 : index
    %4 = vector.load %arg3[%c0_4, %c0_5] : memref<1x128xf32, #tpu.memory_space<vmem>>, vector<1x128xf32>
    %5 = vector.broadcast %4 : vector<1x128xf32> to vector<16x128xf32>
    %6 = arith.addf %3, %5 : vector<16x128xf32>
    %7 = vector.shape_cast %6 : vector<16x128xf32> to vector<8x2x128xf32>
    %c0_6 = arith.constant 0 : index
    %c0_7 = arith.constant 0 : index
    %c0_8 = arith.constant 0 : index
    %8 = vector.load %arg14[%c0_6, %c0_7, %c0_8] : memref<8x2x128xf32, #tpu.memory_space<vmem>>, vector<8x2x128xf32>
    tpu.vector_store %arg14[%c0_6, %c0_7, %c0_8], %7 {strides = array<i32>} : memref<8x2x128xf32, #tpu.memory_space<vmem>>, vector<8x2x128xf32>,
    %c0_9 = arith.constant 0 : index
    %c0_10 = arith.constant 0 : index
    %9 = vector.load %arg6[%c0_9, %c0_10] : memref<8x128xf32, #tpu.memory_space<vmem>>, vector<8x128xf32>
    %cst_11 = arith.constant dense<0.000000e+00> : vector<16x128xf32>
    %10 = tpu.matmul %1, %9, %cst_11 {dimension_numbers = #tpu.dot_dimension_numbers<[1], [0], [0], [1], [0, 0, 1, 1], [], []>} : vector<16x8xf32>, vector<8x128xf32>, vector<16x128xf32> -> vector<16x128xf32>
    %c0_12 = arith.constant 0 : index
    %c0_13 = arith.constant 0 : index
    %11 = vector.load %arg8[%c0_12, %c0_13] : memref<1x128xf32, #tpu.memory_space<vmem>>, vector<1x128xf32>
    %12 = vector.broadcast %11 : vector<1x128xf32> to vector<16x128xf32>
    %13 = arith.addf %10, %12 : vector<16x128xf32>
    %14 = vector.shape_cast %13 : vector<16x128xf32> to vector<8x2x128xf32>
    %c0_14 = arith.constant 0 : index
    %c0_15 = arith.constant 0 : index
    %c0_16 = arith.constant 0 : index
    %15 = vector.load %arg15[%c0_14, %c0_15, %c0_16] : memref<8x2x128xf32, #tpu.memory_space<vmem>>, vector<8x2x128xf32>
    tpu.vector_store %arg15[%c0_14, %c0_15, %c0_16], %14 {strides = array<i32>} : memref<8x2x128xf32, #tpu.memory_space<vmem>>, vector<8x2x128xf32>,
    %c0_17 = arith.constant 0 : index
    %c0_18 = arith.constant 0 : index
    %16 = vector.load %arg2[%c0_17, %c0_18] : memref<32x128xf32, #tpu.memory_space<vmem>>, vector<32x128xf32>
    %cst_19 = arith.constant 0.000000e+00 : f32
    %17 = vector.broadcast %cst_19 : f32 to vector<2x32xf32>
    %cst_20 = arith.constant 0.000000e+00 : f32
    %18 = vector.broadcast %cst_20 : f32 to vector<2x32xf32>
    %c0_21 = arith.constant 0 : index
    %c0_22 = arith.constant 0 : index
    %c0_23 = arith.constant 0 : index
    %19 = vector.load %arg14[%c0_21, %c0_22, %c0_23] : memref<8x2x128xf32, #tpu.memory_space<vmem>>, vector<1x2x128xf32>
    %20 = vector.shape_cast %19 : vector<1x2x128xf32> to vector<2x128xf32>
    %cst_24 = arith.constant dense<0.000000e+00> : vector<2x128xf32>
    %21 = tpu.matmul %17, %16, %cst_24 {dimension_numbers = #tpu.dot_dimension_numbers<[1], [0], [0], [1], [0, 0, 1, 1], [], []>} : vector<2x32xf32>, vector<32x128xf32>, vector<2x128xf32> -> vector<2x128xf32>
    %22 = arith.addf %20, %21 : vector<2x128xf32>
    %23 = vector.extract_strided_slice %22 {offsets = [0, 0], sizes = [2, 32], strides = [1, 1]} : vector<2x128xf32> to vector<2x32xf32>
    %24 = arith.negf %23 : vector<2x32xf32>
    %25 = math.exp %24 : vector<2x32xf32>
    %cst_25 = arith.constant 1.000000e+00 : f32
    %26 = vector.broadcast %cst_25 : f32 to vector<2x32xf32>
    %27 = arith.addf %26, %25 : vector<2x32xf32>
    %28 = arith.divf %26, %27 : vector<2x32xf32>
    %29 = vector.extract_strided_slice %22 {offsets = [0, 32], sizes = [2, 32], strides = [1, 1]} : vector<2x128xf32> to vector<2x32xf32>
    %30 = arith.negf %29 : vector<2x32xf32>
    %31 = math.exp %30 : vector<2x32xf32>
    %cst_26 = arith.constant 1.000000e+00 : f32
    %32 = vector.broadcast %cst_26 : f32 to vector<2x32xf32>
    %33 = arith.addf %32, %31 : vector<2x32xf32>
    %34 = arith.divf %32, %33 : vector<2x32xf32>
    %35 = vector.extract_strided_slice %22 {offsets = [0, 64], sizes = [2, 32], strides = [1, 1]} : vector<2x128xf32> to vector<2x32xf32>
    %36 = math.tanh %35 : vector<2x32xf32>
    %37 = vector.extract_strided_slice %22 {offsets = [0, 96], sizes = [2, 32], strides = [1, 1]} : vector<2x128xf32> to vector<2x32xf32>
    %38 = arith.negf %37 : vector<2x32xf32>
    %39 = math.exp %38 : vector<2x32xf32>
    %cst_27 = arith.constant 1.000000e+00 : f32
    %40 = vector.broadcast %cst_27 : f32 to vector<2x32xf32>
    %41 = arith.addf %40, %39 : vector<2x32xf32>
    %42 = arith.divf %40, %41 : vector<2x32xf32>
    %43 = arith.mulf %34, %18 : vector<2x32xf32>
    %44 = arith.mulf %28, %36 : vector<2x32xf32>
    %45 = arith.addf %43, %44 : vector<2x32xf32>
    %46 = math.tanh %45 : vector<2x32xf32>
    %47 = arith.mulf %42, %46 : vector<2x32xf32>
    %c1 = arith.constant 1 : index
    %c0_28 = arith.constant 0 : index
    %c0_29 = arith.constant 0 : index
    %48 = vector.load %arg14[%c1, %c0_28, %c0_29] : memref<8x2x128xf32, #tpu.memory_space<vmem>>, vector<1x2x128xf32>
    %49 = vector.shape_cast %48 : vector<1x2x128xf32> to vector<2x128xf32>
    %cst_30 = arith.constant dense<0.000000e+00> : vector<2x128xf32>
    %50 = tpu.matmul %47, %16, %cst_30 {dimension_numbers = #tpu.dot_dimension_numbers<[1], [0], [0], [1], [0, 0, 1, 1], [], []>} : vector<2x32xf32>, vector<32x128xf32>, vector<2x128xf32> -> vector<2x128xf32>
    %51 = arith.addf %49, %50 : vector<2x128xf32>
    %52 = vector.extract_strided_slice %51 {offsets = [0, 0], sizes = [2, 32], strides = [1, 1]} : vector<2x128xf32> to vector<2x32xf32>
    %53 = arith.negf %52 : vector<2x32xf32>
    %54 = math.exp %53 : vector<2x32xf32>
    %cst_31 = arith.constant 1.000000e+00 : f32
    %55 = vector.broadcast %cst_31 : f32 to vector<2x32xf32>
    %56 = arith.addf %55, %54 : vector<2x32xf32>
    %57 = arith.divf %55, %56 : vector<2x32xf32>
    %58 = vector.extract_strided_slice %51 {offsets = [0, 32], sizes = [2, 32], strides = [1, 1]} : vector<2x128xf32> to vector<2x32xf32>
    %59 = arith.negf %58 : vector<2x32xf32>
    %60 = math.exp %59 : vector<2x32xf32>
    %cst_32 = arith.constant 1.000000e+00 : f32
    %61 = vector.broadcast %cst_32 : f32 to vector<2x32xf32>
    %62 = arith.addf %61, %60 : vector<2x32xf32>
    %63 = arith.divf %61, %62 : vector<2x32xf32>
    %64 = vector.extract_strided_slice %51 {offsets = [0, 64], sizes = [2, 32], strides = [1, 1]} : vector<2x128xf32> to vector<2x32xf32>
    %65 = math.tanh %64 : vector<2x32xf32>
    %66 = vector.extract_strided_slice %51 {offsets = [0, 96], sizes = [2, 32], strides = [1, 1]} : vector<2x128xf32> to vector<2x32xf32>
    %67 = arith.negf %66 : vector<2x32xf32>
    %68 = math.exp %67 : vector<2x32xf32>
    %cst_33 = arith.constant 1.000000e+00 : f32
    %69 = vector.broadcast %cst_33 : f32 to vector<2x32xf32>
    %70 = arith.addf %69, %68 : vector<2x32xf32>
    %71 = arith.divf %69, %70 : vector<2x32xf32>
    %72 = arith.mulf %63, %45 : vector<2x32xf32>
    %73 = arith.mulf %57, %65 : vector<2x32xf32>
    %74 = arith.addf %72, %73 : vector<2x32xf32>
    %75 = math.tanh %74 : vector<2x32xf32>
    %76 = arith.mulf %71, %75 : vector<2x32xf32>
    %c2 = arith.constant 2 : index
    %c0_34 = arith.constant 0 : index
    %c0_35 = arith.constant 0 : index
    %77 = vector.load %arg14[%c2, %c0_34, %c0_35] : memref<8x2x128xf32, #tpu.memory_space<vmem>>, vector<1x2x128xf32>
    %78 = vector.shape_cast %77 : vector<1x2x128xf32> to vector<2x128xf32>
    %cst_36 = arith.constant dense<0.000000e+00> : vector<2x128xf32>
    %79 = tpu.matmul %76, %16, %cst_36 {dimension_numbers = #tpu.dot_dimension_numbers<[1], [0], [0], [1], [0, 0, 1, 1], [], []>} : vector<2x32xf32>, vector<32x128xf32>, vector<2x128xf32> -> vector<2x128xf32>
    %80 = arith.addf %78, %79 : vector<2x128xf32>
    %81 = vector.extract_strided_slice %80 {offsets = [0, 0], sizes = [2, 32], strides = [1, 1]} : vector<2x128xf32> to vector<2x32xf32>
    %82 = arith.negf %81 : vector<2x32xf32>
    %83 = math.exp %82 : vector<2x32xf32>
    %cst_37 = arith.constant 1.000000e+00 : f32
    %84 = vector.broadcast %cst_37 : f32 to vector<2x32xf32>
    %85 = arith.addf %84, %83 : vector<2x32xf32>
    %86 = arith.divf %84, %85 : vector<2x32xf32>
    %87 = vector.extract_strided_slice %80 {offsets = [0, 32], sizes = [2, 32], strides = [1, 1]} : vector<2x128xf32> to vector<2x32xf32>
    %88 = arith.negf %87 : vector<2x32xf32>
    %89 = math.exp %88 : vector<2x32xf32>
    %cst_38 = arith.constant 1.000000e+00 : f32
    %90 = vector.broadcast %cst_38 : f32 to vector<2x32xf32>
    %91 = arith.addf %90, %89 : vector<2x32xf32>
    %92 = arith.divf %90, %91 : vector<2x32xf32>
    %93 = vector.extract_strided_slice %80 {offsets = [0, 64], sizes = [2, 32], strides = [1, 1]} : vector<2x128xf32> to vector<2x32xf32>
    %94 = math.tanh %93 : vector<2x32xf32>
    %95 = vector.extract_strided_slice %80 {offsets = [0, 96], sizes = [2, 32], strides = [1, 1]} : vector<2x128xf32> to vector<2x32xf32>
    %96 = arith.negf %95 : vector<2x32xf32>
    %97 = math.exp %96 : vector<2x32xf32>
    %cst_39 = arith.constant 1.000000e+00 : f32
    %98 = vector.broadcast %cst_39 : f32 to vector<2x32xf32>
    %99 = arith.addf %98, %97 : vector<2x32xf32>
    %100 = arith.divf %98, %99 : vector<2x32xf32>
    %101 = arith.mulf %92, %74 : vector<2x32xf32>
    %102 = arith.mulf %86, %94 : vector<2x32xf32>
    %103 = arith.addf %101, %102 : vector<2x32xf32>
    %104 = math.tanh %103 : vector<2x32xf32>
    %105 = arith.mulf %100, %104 : vector<2x32xf32>
    %c3 = arith.constant 3 : index
    %c0_40 = arith.constant 0 : index
    %c0_41 = arith.constant 0 : index
    %106 = vector.load %arg14[%c3, %c0_40, %c0_41] : memref<8x2x128xf32, #tpu.memory_space<vmem>>, vector<1x2x128xf32>
    %107 = vector.shape_cast %106 : vector<1x2x128xf32> to vector<2x128xf32>
    %cst_42 = arith.constant dense<0.000000e+00> : vector<2x128xf32>
    %108 = tpu.matmul %105, %16, %cst_42 {dimension_numbers = #tpu.dot_dimension_numbers<[1], [0], [0], [1], [0, 0, 1, 1], [], []>} : vector<2x32xf32>, vector<32x128xf32>, vector<2x128xf32> -> vector<2x128xf32>
    %109 = arith.addf %107, %108 : vector<2x128xf32>
    %110 = vector.extract_strided_slice %109 {offsets = [0, 0], sizes = [2, 32], strides = [1, 1]} : vector<2x128xf32> to vector<2x32xf32>
    %111 = arith.negf %110 : vector<2x32xf32>
    %112 = math.exp %111 : vector<2x32xf32>
    %cst_43 = arith.constant 1.000000e+00 : f32
    %113 = vector.broadcast %cst_43 : f32 to vector<2x32xf32>
    %114 = arith.addf %113, %112 : vector<2x32xf32>
    %115 = arith.divf %113, %114 : vector<2x32xf32>
    %116 = vector.extract_strided_slice %109 {offsets = [0, 32], sizes = [2, 32], strides = [1, 1]} : vector<2x128xf32> to vector<2x32xf32>
    %117 = arith.negf %116 : vector<2x32xf32>
    %118 = math.exp %117 : vector<2x32xf32>
    %cst_44 = arith.constant 1.000000e+00 : f32
    %119 = vector.broadcast %cst_44 : f32 to vector<2x32xf32>
    %120 = arith.addf %119, %118 : vector<2x32xf32>
    %121 = arith.divf %119, %120 : vector<2x32xf32>
    %122 = vector.extract_strided_slice %109 {offsets = [0, 64], sizes = [2, 32], strides = [1, 1]} : vector<2x128xf32> to vector<2x32xf32>
    %123 = math.tanh %122 : vector<2x32xf32>
    %124 = vector.extract_strided_slice %109 {offsets = [0, 96], sizes = [2, 32], strides = [1, 1]} : vector<2x128xf32> to vector<2x32xf32>
    %125 = arith.negf %124 : vector<2x32xf32>
    %126 = math.exp %125 : vector<2x32xf32>
    %cst_45 = arith.constant 1.000000e+00 : f32
    %127 = vector.broadcast %cst_45 : f32 to vector<2x32xf32>
    %128 = arith.addf %127, %126 : vector<2x32xf32>
    %129 = arith.divf %127, %128 : vector<2x32xf32>
    %130 = arith.mulf %121, %103 : vector<2x32xf32>
    %131 = arith.mulf %115, %123 : vector<2x32xf32>
    %132 = arith.addf %130, %131 : vector<2x32xf32>
    %133 = math.tanh %132 : vector<2x32xf32>
    %134 = arith.mulf %129, %133 : vector<2x32xf32>
    %c4 = arith.constant 4 : index
    %c0_46 = arith.constant 0 : index
    %c0_47 = arith.constant 0 : index
    %135 = vector.load %arg14[%c4, %c0_46, %c0_47] : memref<8x2x128xf32, #tpu.memory_space<vmem>>, vector<1x2x128xf32>
    %136 = vector.shape_cast %135 : vector<1x2x128xf32> to vector<2x128xf32>
    %cst_48 = arith.constant dense<0.000000e+00> : vector<2x128xf32>
    %137 = tpu.matmul %134, %16, %cst_48 {dimension_numbers = #tpu.dot_dimension_numbers<[1], [0], [0], [1], [0, 0, 1, 1], [], []>} : vector<2x32xf32>, vector<32x128xf32>, vector<2x128xf32> -> vector<2x128xf32>
    %138 = arith.addf %136, %137 : vector<2x128xf32>
    %139 = vector.extract_strided_slice %138 {offsets = [0, 0], sizes = [2, 32], strides = [1, 1]} : vector<2x128xf32> to vector<2x32xf32>
    %140 = arith.negf %139 : vector<2x32xf32>
    %141 = math.exp %140 : vector<2x32xf32>
    %cst_49 = arith.constant 1.000000e+00 : f32
    %142 = vector.broadcast %cst_49 : f32 to vector<2x32xf32>
    %143 = arith.addf %142, %141 : vector<2x32xf32>
    %144 = arith.divf %142, %143 : vector<2x32xf32>
    %145 = vector.extract_strided_slice %138 {offsets = [0, 32], sizes = [2, 32], strides = [1, 1]} : vector<2x128xf32> to vector<2x32xf32>
    %146 = arith.negf %145 : vector<2x32xf32>
    %147 = math.exp %146 : vector<2x32xf32>
    %cst_50 = arith.constant 1.000000e+00 : f32
    %148 = vector.broadcast %cst_50 : f32 to vector<2x32xf32>
    %149 = arith.addf %148, %147 : vector<2x32xf32>
    %150 = arith.divf %148, %149 : vector<2x32xf32>
    %151 = vector.extract_strided_slice %138 {offsets = [0, 64], sizes = [2, 32], strides = [1, 1]} : vector<2x128xf32> to vector<2x32xf32>
    %152 = math.tanh %151 : vector<2x32xf32>
    %153 = vector.extract_strided_slice %138 {offsets = [0, 96], sizes = [2, 32], strides = [1, 1]} : vector<2x128xf32> to vector<2x32xf32>
    %154 = arith.negf %153 : vector<2x32xf32>
    %155 = math.exp %154 : vector<2x32xf32>
    %cst_51 = arith.constant 1.000000e+00 : f32
    %156 = vector.broadcast %cst_51 : f32 to vector<2x32xf32>
    %157 = arith.addf %156, %155 : vector<2x32xf32>
    %158 = arith.divf %156, %157 : vector<2x32xf32>
    %159 = arith.mulf %150, %132 : vector<2x32xf32>
    %160 = arith.mulf %144, %152 : vector<2x32xf32>
    %161 = arith.addf %159, %160 : vector<2x32xf32>
    %162 = math.tanh %161 : vector<2x32xf32>
    %163 = arith.mulf %158, %162 : vector<2x32xf32>
    %c5 = arith.constant 5 : index
    %c0_52 = arith.constant 0 : index
    %c0_53 = arith.constant 0 : index
    %164 = vector.load %arg14[%c5, %c0_52, %c0_53] : memref<8x2x128xf32, #tpu.memory_space<vmem>>, vector<1x2x128xf32>
    %165 = vector.shape_cast %164 : vector<1x2x128xf32> to vector<2x128xf32>
    %cst_54 = arith.constant dense<0.000000e+00> : vector<2x128xf32>
    %166 = tpu.matmul %163, %16, %cst_54 {dimension_numbers = #tpu.dot_dimension_numbers<[1], [0], [0], [1], [0, 0, 1, 1], [], []>} : vector<2x32xf32>, vector<32x128xf32>, vector<2x128xf32> -> vector<2x128xf32>
    %167 = arith.addf %165, %166 : vector<2x128xf32>
    %168 = vector.extract_strided_slice %167 {offsets = [0, 0], sizes = [2, 32], strides = [1, 1]} : vector<2x128xf32> to vector<2x32xf32>
    %169 = arith.negf %168 : vector<2x32xf32>
    %170 = math.exp %169 : vector<2x32xf32>
    %cst_55 = arith.constant 1.000000e+00 : f32
    %171 = vector.broadcast %cst_55 : f32 to vector<2x32xf32>
    %172 = arith.addf %171, %170 : vector<2x32xf32>
    %173 = arith.divf %171, %172 : vector<2x32xf32>
    %174 = vector.extract_strided_slice %167 {offsets = [0, 32], sizes = [2, 32], strides = [1, 1]} : vector<2x128xf32> to vector<2x32xf32>
    %175 = arith.negf %174 : vector<2x32xf32>
    %176 = math.exp %175 : vector<2x32xf32>
    %cst_56 = arith.constant 1.000000e+00 : f32
    %177 = vector.broadcast %cst_56 : f32 to vector<2x32xf32>
    %178 = arith.addf %177, %176 : vector<2x32xf32>
    %179 = arith.divf %177, %178 : vector<2x32xf32>
    %180 = vector.extract_strided_slice %167 {offsets = [0, 64], sizes = [2, 32], strides = [1, 1]} : vector<2x128xf32> to vector<2x32xf32>
    %181 = math.tanh %180 : vector<2x32xf32>
    %182 = vector.extract_strided_slice %167 {offsets = [0, 96], sizes = [2, 32], strides = [1, 1]} : vector<2x128xf32> to vector<2x32xf32>
    %183 = arith.negf %182 : vector<2x32xf32>
    %184 = math.exp %183 : vector<2x32xf32>
    %cst_57 = arith.constant 1.000000e+00 : f32
    %185 = vector.broadcast %cst_57 : f32 to vector<2x32xf32>
    %186 = arith.addf %185, %184 : vector<2x32xf32>
    %187 = arith.divf %185, %186 : vector<2x32xf32>
    %188 = arith.mulf %179, %161 : vector<2x32xf32>
    %189 = arith.mulf %173, %181 : vector<2x32xf32>
    %190 = arith.addf %188, %189 : vector<2x32xf32>
    %191 = math.tanh %190 : vector<2x32xf32>
    %192 = arith.mulf %187, %191 : vector<2x32xf32>
    %c6 = arith.constant 6 : index
    %c0_58 = arith.constant 0 : index
    %c0_59 = arith.constant 0 : index
    %193 = vector.load %arg14[%c6, %c0_58, %c0_59] : memref<8x2x128xf32, #tpu.memory_space<vmem>>, vector<1x2x128xf32>
    %194 = vector.shape_cast %193 : vector<1x2x128xf32> to vector<2x128xf32>
    %cst_60 = arith.constant dense<0.000000e+00> : vector<2x128xf32>
    %195 = tpu.matmul %192, %16, %cst_60 {dimension_numbers = #tpu.dot_dimension_numbers<[1], [0], [0], [1], [0, 0, 1, 1], [], []>} : vector<2x32xf32>, vector<32x128xf32>, vector<2x128xf32> -> vector<2x128xf32>
    %196 = arith.addf %194, %195 : vector<2x128xf32>
    %197 = vector.extract_strided_slice %196 {offsets = [0, 0], sizes = [2, 32], strides = [1, 1]} : vector<2x128xf32> to vector<2x32xf32>
    %198 = arith.negf %197 : vector<2x32xf32>
    %199 = math.exp %198 : vector<2x32xf32>
    %cst_61 = arith.constant 1.000000e+00 : f32
    %200 = vector.broadcast %cst_61 : f32 to vector<2x32xf32>
    %201 = arith.addf %200, %199 : vector<2x32xf32>
    %202 = arith.divf %200, %201 : vector<2x32xf32>
    %203 = vector.extract_strided_slice %196 {offsets = [0, 32], sizes = [2, 32], strides = [1, 1]} : vector<2x128xf32> to vector<2x32xf32>
    %204 = arith.negf %203 : vector<2x32xf32>
    %205 = math.exp %204 : vector<2x32xf32>
    %cst_62 = arith.constant 1.000000e+00 : f32
    %206 = vector.broadcast %cst_62 : f32 to vector<2x32xf32>
    %207 = arith.addf %206, %205 : vector<2x32xf32>
    %208 = arith.divf %206, %207 : vector<2x32xf32>
    %209 = vector.extract_strided_slice %196 {offsets = [0, 64], sizes = [2, 32], strides = [1, 1]} : vector<2x128xf32> to vector<2x32xf32>
    %210 = math.tanh %209 : vector<2x32xf32>
    %211 = vector.extract_strided_slice %196 {offsets = [0, 96], sizes = [2, 32], strides = [1, 1]} : vector<2x128xf32> to vector<2x32xf32>
    %212 = arith.negf %211 : vector<2x32xf32>
    %213 = math.exp %212 : vector<2x32xf32>
    %cst_63 = arith.constant 1.000000e+00 : f32
    %214 = vector.broadcast %cst_63 : f32 to vector<2x32xf32>
    %215 = arith.addf %214, %213 : vector<2x32xf32>
    %216 = arith.divf %214, %215 : vector<2x32xf32>
    %217 = arith.mulf %208, %190 : vector<2x32xf32>
    %218 = arith.mulf %202, %210 : vector<2x32xf32>
    %219 = arith.addf %217, %218 : vector<2x32xf32>
    %220 = math.tanh %219 : vector<2x32xf32>
    %221 = arith.mulf %216, %220 : vector<2x32xf32>
    %c7 = arith.constant 7 : index
    %c0_64 = arith.constant 0 : index
    %c0_65 = arith.constant 0 : index
    %222 = vector.load %arg14[%c7, %c0_64, %c0_65] : memref<8x2x128xf32, #tpu.memory_space<vmem>>, vector<1x2x128xf32>
    %223 = vector.shape_cast %222 : vector<1x2x128xf32> to vector<2x128xf32>
    %cst_66 = arith.constant dense<0.000000e+00> : vector<2x128xf32>
    %224 = tpu.matmul %221, %16, %cst_66 {dimension_numbers = #tpu.dot_dimension_numbers<[1], [0], [0], [1], [0, 0, 1, 1], [], []>} : vector<2x32xf32>, vector<32x128xf32>, vector<2x128xf32> -> vector<2x128xf32>
    %225 = arith.addf %223, %224 : vector<2x128xf32>
    %226 = vector.extract_strided_slice %225 {offsets = [0, 0], sizes = [2, 32], strides = [1, 1]} : vector<2x128xf32> to vector<2x32xf32>
    %227 = arith.negf %226 : vector<2x32xf32>
    %228 = math.exp %227 : vector<2x32xf32>
    %cst_67 = arith.constant 1.000000e+00 : f32
    %229 = vector.broadcast %cst_67 : f32 to vector<2x32xf32>
    %230 = arith.addf %229, %228 : vector<2x32xf32>
    %231 = arith.divf %229, %230 : vector<2x32xf32>
    %232 = vector.extract_strided_slice %225 {offsets = [0, 32], sizes = [2, 32], strides = [1, 1]} : vector<2x128xf32> to vector<2x32xf32>
    %233 = arith.negf %232 : vector<2x32xf32>
    %234 = math.exp %233 : vector<2x32xf32>
    %cst_68 = arith.constant 1.000000e+00 : f32
    %235 = vector.broadcast %cst_68 : f32 to vector<2x32xf32>
    %236 = arith.addf %235, %234 : vector<2x32xf32>
    %237 = arith.divf %235, %236 : vector<2x32xf32>
    %238 = vector.extract_strided_slice %225 {offsets = [0, 64], sizes = [2, 32], strides = [1, 1]} : vector<2x128xf32> to vector<2x32xf32>
    %239 = math.tanh %238 : vector<2x32xf32>
    %240 = vector.extract_strided_slice %225 {offsets = [0, 96], sizes = [2, 32], strides = [1, 1]} : vector<2x128xf32> to vector<2x32xf32>
    %241 = arith.negf %240 : vector<2x32xf32>
    %242 = math.exp %241 : vector<2x32xf32>
    %cst_69 = arith.constant 1.000000e+00 : f32
    %243 = vector.broadcast %cst_69 : f32 to vector<2x32xf32>
    %244 = arith.addf %243, %242 : vector<2x32xf32>
    %245 = arith.divf %243, %244 : vector<2x32xf32>
    %246 = arith.mulf %237, %219 : vector<2x32xf32>
    %247 = arith.mulf %231, %239 : vector<2x32xf32>
    %248 = arith.addf %246, %247 : vector<2x32xf32>
    %249 = math.tanh %248 : vector<2x32xf32>
    %250 = arith.mulf %245, %249 : vector<2x32xf32>
    %c0_70 = arith.constant 0 : index
    %c0_71 = arith.constant 0 : index
    %251 = vector.load %arg7[%c0_70, %c0_71] : memref<32x128xf32, #tpu.memory_space<vmem>>, vector<32x128xf32>
    %c7_72 = arith.constant 7 : index
    %c0_73 = arith.constant 0 : index
    %c0_74 = arith.constant 0 : index
    %252 = vector.load %arg16[%c7_72, %c0_73, %c0_74] : memref<8x2x32xf32, #tpu.memory_space<vmem>>, vector<1x2x32xf32>
    %253 = vector.shape_cast %252 : vector<1x2x32xf32> to vector<2x32xf32>
    %254 = vector.shape_cast %250 : vector<2x32xf32> to vector<1x2x32xf32>
    tpu.vector_store %arg16[%c7_72, %c0_73, %c0_74], %254 {strides = array<i32>} : memref<8x2x32xf32, #tpu.memory_space<vmem>>, vector<1x2x32xf32>,
    %c7_75 = arith.constant 7 : index
    %c0_76 = arith.constant 0 : index
    %c0_77 = arith.constant 0 : index
    %255 = vector.load %arg15[%c7_75, %c0_76, %c0_77] : memref<8x2x128xf32, #tpu.memory_space<vmem>>, vector<1x2x128xf32>
    %256 = vector.shape_cast %255 : vector<1x2x128xf32> to vector<2x128xf32>
    %cst_78 = arith.constant dense<0.000000e+00> : vector<2x128xf32>
    %257 = tpu.matmul %250, %251, %cst_78 {dimension_numbers = #tpu.dot_dimension_numbers<[1], [0], [0], [1], [0, 0, 1, 1], [], []>} : vector<2x32xf32>, vector<32x128xf32>, vector<2x128xf32> -> vector<2x128xf32>
    %258 = arith.addf %256, %257 : vector<2x128xf32>
    %259 = vector.extract_strided_slice %258 {offsets = [0, 0], sizes = [2, 32], strides = [1, 1]} : vector<2x128xf32> to vector<2x32xf32>
    %260 = arith.negf %259 : vector<2x32xf32>
    %261 = math.exp %260 : vector<2x32xf32>
    %cst_79 = arith.constant 1.000000e+00 : f32
    %262 = vector.broadcast %cst_79 : f32 to vector<2x32xf32>
    %263 = arith.addf %262, %261 : vector<2x32xf32>
    %264 = arith.divf %262, %263 : vector<2x32xf32>
    %265 = vector.extract_strided_slice %258 {offsets = [0, 32], sizes = [2, 32], strides = [1, 1]} : vector<2x128xf32> to vector<2x32xf32>
    %266 = arith.negf %265 : vector<2x32xf32>
    %267 = math.exp %266 : vector<2x32xf32>
    %cst_80 = arith.constant 1.000000e+00 : f32
    %268 = vector.broadcast %cst_80 : f32 to vector<2x32xf32>
    %269 = arith.addf %268, %267 : vector<2x32xf32>
    %270 = arith.divf %268, %269 : vector<2x32xf32>
    %271 = vector.extract_strided_slice %258 {offsets = [0, 64], sizes = [2, 32], strides = [1, 1]} : vector<2x128xf32> to vector<2x32xf32>
    %272 = math.tanh %271 : vector<2x32xf32>
    %273 = vector.extract_strided_slice %258 {offsets = [0, 96], sizes = [2, 32], strides = [1, 1]} : vector<2x128xf32> to vector<2x32xf32>
    %274 = arith.negf %273 : vector<2x32xf32>
    %275 = math.exp %274 : vector<2x32xf32>
    %cst_81 = arith.constant 1.000000e+00 : f32
    %276 = vector.broadcast %cst_81 : f32 to vector<2x32xf32>
    %277 = arith.addf %276, %275 : vector<2x32xf32>
    %278 = arith.divf %276, %277 : vector<2x32xf32>
    %279 = arith.mulf %270, %248 : vector<2x32xf32>
    %280 = arith.mulf %264, %272 : vector<2x32xf32>
    %281 = arith.addf %279, %280 : vector<2x32xf32>
    %282 = math.tanh %281 : vector<2x32xf32>
    %283 = arith.mulf %278, %282 : vector<2x32xf32>
    %c6_82 = arith.constant 6 : index
    %c0_83 = arith.constant 0 : index
    %c0_84 = arith.constant 0 : index
    %284 = vector.load %arg16[%c6_82, %c0_83, %c0_84] : memref<8x2x32xf32, #tpu.memory_space<vmem>>, vector<1x2x32xf32>
    %285 = vector.shape_cast %284 : vector<1x2x32xf32> to vector<2x32xf32>
    %286 = vector.shape_cast %283 : vector<2x32xf32> to vector<1x2x32xf32>
    tpu.vector_store %arg16[%c6_82, %c0_83, %c0_84], %286 {strides = array<i32>} : memref<8x2x32xf32, #tpu.memory_space<vmem>>, vector<1x2x32xf32>,
    %c6_85 = arith.constant 6 : index
    %c0_86 = arith.constant 0 : index
    %c0_87 = arith.constant 0 : index
    %287 = vector.load %arg15[%c6_85, %c0_86, %c0_87] : memref<8x2x128xf32, #tpu.memory_space<vmem>>, vector<1x2x128xf32>
    %288 = vector.shape_cast %287 : vector<1x2x128xf32> to vector<2x128xf32>
    %cst_88 = arith.constant dense<0.000000e+00> : vector<2x128xf32>
    %289 = tpu.matmul %283, %251, %cst_88 {dimension_numbers = #tpu.dot_dimension_numbers<[1], [0], [0], [1], [0, 0, 1, 1], [], []>} : vector<2x32xf32>, vector<32x128xf32>, vector<2x128xf32> -> vector<2x128xf32>
    %290 = arith.addf %288, %289 : vector<2x128xf32>
    %291 = vector.extract_strided_slice %290 {offsets = [0, 0], sizes = [2, 32], strides = [1, 1]} : vector<2x128xf32> to vector<2x32xf32>
    %292 = arith.negf %291 : vector<2x32xf32>
    %293 = math.exp %292 : vector<2x32xf32>
    %cst_89 = arith.constant 1.000000e+00 : f32
    %294 = vector.broadcast %cst_89 : f32 to vector<2x32xf32>
    %295 = arith.addf %294, %293 : vector<2x32xf32>
    %296 = arith.divf %294, %295 : vector<2x32xf32>
    %297 = vector.extract_strided_slice %290 {offsets = [0, 32], sizes = [2, 32], strides = [1, 1]} : vector<2x128xf32> to vector<2x32xf32>
    %298 = arith.negf %297 : vector<2x32xf32>
    %299 = math.exp %298 : vector<2x32xf32>
    %cst_90 = arith.constant 1.000000e+00 : f32
    %300 = vector.broadcast %cst_90 : f32 to vector<2x32xf32>
    %301 = arith.addf %300, %299 : vector<2x32xf32>
    %302 = arith.divf %300, %301 : vector<2x32xf32>
    %303 = vector.extract_strided_slice %290 {offsets = [0, 64], sizes = [2, 32], strides = [1, 1]} : vector<2x128xf32> to vector<2x32xf32>
    %304 = math.tanh %303 : vector<2x32xf32>
    %305 = vector.extract_strided_slice %290 {offsets = [0, 96], sizes = [2, 32], strides = [1, 1]} : vector<2x128xf32> to vector<2x32xf32>
    %306 = arith.negf %305 : vector<2x32xf32>
    %307 = math.exp %306 : vector<2x32xf32>
    %cst_91 = arith.constant 1.000000e+00 : f32
    %308 = vector.broadcast %cst_91 : f32 to vector<2x32xf32>
    %309 = arith.addf %308, %307 : vector<2x32xf32>
    %310 = arith.divf %308, %309 : vector<2x32xf32>
    %311 = arith.mulf %302, %281 : vector<2x32xf32>
    %312 = arith.mulf %296, %304 : vector<2x32xf32>
    %313 = arith.addf %311, %312 : vector<2x32xf32>
    %314 = math.tanh %313 : vector<2x32xf32>
    %315 = arith.mulf %310, %314 : vector<2x32xf32>
    %c5_92 = arith.constant 5 : index
    %c0_93 = arith.constant 0 : index
    %c0_94 = arith.constant 0 : index
    %316 = vector.load %arg16[%c5_92, %c0_93, %c0_94] : memref<8x2x32xf32, #tpu.memory_space<vmem>>, vector<1x2x32xf32>
    %317 = vector.shape_cast %316 : vector<1x2x32xf32> to vector<2x32xf32>
    %318 = vector.shape_cast %315 : vector<2x32xf32> to vector<1x2x32xf32>
    tpu.vector_store %arg16[%c5_92, %c0_93, %c0_94], %318 {strides = array<i32>} : memref<8x2x32xf32, #tpu.memory_space<vmem>>, vector<1x2x32xf32>,
    %c5_95 = arith.constant 5 : index
    %c0_96 = arith.constant 0 : index
    %c0_97 = arith.constant 0 : index
    %319 = vector.load %arg15[%c5_95, %c0_96, %c0_97] : memref<8x2x128xf32, #tpu.memory_space<vmem>>, vector<1x2x128xf32>
    %320 = vector.shape_cast %319 : vector<1x2x128xf32> to vector<2x128xf32>
    %cst_98 = arith.constant dense<0.000000e+00> : vector<2x128xf32>
    %321 = tpu.matmul %315, %251, %cst_98 {dimension_numbers = #tpu.dot_dimension_numbers<[1], [0], [0], [1], [0, 0, 1, 1], [], []>} : vector<2x32xf32>, vector<32x128xf32>, vector<2x128xf32> -> vector<2x128xf32>
    %322 = arith.addf %320, %321 : vector<2x128xf32>
    %323 = vector.extract_strided_slice %322 {offsets = [0, 0], sizes = [2, 32], strides = [1, 1]} : vector<2x128xf32> to vector<2x32xf32>
    %324 = arith.negf %323 : vector<2x32xf32>
    %325 = math.exp %324 : vector<2x32xf32>
    %cst_99 = arith.constant 1.000000e+00 : f32
    %326 = vector.broadcast %cst_99 : f32 to vector<2x32xf32>
    %327 = arith.addf %326, %325 : vector<2x32xf32>
    %328 = arith.divf %326, %327 : vector<2x32xf32>
    %329 = vector.extract_strided_slice %322 {offsets = [0, 32], sizes = [2, 32], strides = [1, 1]} : vector<2x128xf32> to vector<2x32xf32>
    %330 = arith.negf %329 : vector<2x32xf32>
    %331 = math.exp %330 : vector<2x32xf32>
    %cst_100 = arith.constant 1.000000e+00 : f32
    %332 = vector.broadcast %cst_100 : f32 to vector<2x32xf32>
    %333 = arith.addf %332, %331 : vector<2x32xf32>
    %334 = arith.divf %332, %333 : vector<2x32xf32>
    %335 = vector.extract_strided_slice %322 {offsets = [0, 64], sizes = [2, 32], strides = [1, 1]} : vector<2x128xf32> to vector<2x32xf32>
    %336 = math.tanh %335 : vector<2x32xf32>
    %337 = vector.extract_strided_slice %322 {offsets = [0, 96], sizes = [2, 32], strides = [1, 1]} : vector<2x128xf32> to vector<2x32xf32>
    %338 = arith.negf %337 : vector<2x32xf32>
    %339 = math.exp %338 : vector<2x32xf32>
    %cst_101 = arith.constant 1.000000e+00 : f32
    %340 = vector.broadcast %cst_101 : f32 to vector<2x32xf32>
    %341 = arith.addf %340, %339 : vector<2x32xf32>
    %342 = arith.divf %340, %341 : vector<2x32xf32>
    %343 = arith.mulf %334, %313 : vector<2x32xf32>
    %344 = arith.mulf %328, %336 : vector<2x32xf32>
    %345 = arith.addf %343, %344 : vector<2x32xf32>
    %346 = math.tanh %345 : vector<2x32xf32>
    %347 = arith.mulf %342, %346 : vector<2x32xf32>
    %c4_102 = arith.constant 4 : index
    %c0_103 = arith.constant 0 : index
    %c0_104 = arith.constant 0 : index
    %348 = vector.load %arg16[%c4_102, %c0_103, %c0_104] : memref<8x2x32xf32, #tpu.memory_space<vmem>>, vector<1x2x32xf32>
    %349 = vector.shape_cast %348 : vector<1x2x32xf32> to vector<2x32xf32>
    %350 = vector.shape_cast %347 : vector<2x32xf32> to vector<1x2x32xf32>
    tpu.vector_store %arg16[%c4_102, %c0_103, %c0_104], %350 {strides = array<i32>} : memref<8x2x32xf32, #tpu.memory_space<vmem>>, vector<1x2x32xf32>,
    %c4_105 = arith.constant 4 : index
    %c0_106 = arith.constant 0 : index
    %c0_107 = arith.constant 0 : index
    %351 = vector.load %arg15[%c4_105, %c0_106, %c0_107] : memref<8x2x128xf32, #tpu.memory_space<vmem>>, vector<1x2x128xf32>
    %352 = vector.shape_cast %351 : vector<1x2x128xf32> to vector<2x128xf32>
    %cst_108 = arith.constant dense<0.000000e+00> : vector<2x128xf32>
    %353 = tpu.matmul %347, %251, %cst_108 {dimension_numbers = #tpu.dot_dimension_numbers<[1], [0], [0], [1], [0, 0, 1, 1], [], []>} : vector<2x32xf32>, vector<32x128xf32>, vector<2x128xf32> -> vector<2x128xf32>
    %354 = arith.addf %352, %353 : vector<2x128xf32>
    %355 = vector.extract_strided_slice %354 {offsets = [0, 0], sizes = [2, 32], strides = [1, 1]} : vector<2x128xf32> to vector<2x32xf32>
    %356 = arith.negf %355 : vector<2x32xf32>
    %357 = math.exp %356 : vector<2x32xf32>
    %cst_109 = arith.constant 1.000000e+00 : f32
    %358 = vector.broadcast %cst_109 : f32 to vector<2x32xf32>
    %359 = arith.addf %358, %357 : vector<2x32xf32>
    %360 = arith.divf %358, %359 : vector<2x32xf32>
    %361 = vector.extract_strided_slice %354 {offsets = [0, 32], sizes = [2, 32], strides = [1, 1]} : vector<2x128xf32> to vector<2x32xf32>
    %362 = arith.negf %361 : vector<2x32xf32>
    %363 = math.exp %362 : vector<2x32xf32>
    %cst_110 = arith.constant 1.000000e+00 : f32
    %364 = vector.broadcast %cst_110 : f32 to vector<2x32xf32>
    %365 = arith.addf %364, %363 : vector<2x32xf32>
    %366 = arith.divf %364, %365 : vector<2x32xf32>
    %367 = vector.extract_strided_slice %354 {offsets = [0, 64], sizes = [2, 32], strides = [1, 1]} : vector<2x128xf32> to vector<2x32xf32>
    %368 = math.tanh %367 : vector<2x32xf32>
    %369 = vector.extract_strided_slice %354 {offsets = [0, 96], sizes = [2, 32], strides = [1, 1]} : vector<2x128xf32> to vector<2x32xf32>
    %370 = arith.negf %369 : vector<2x32xf32>
    %371 = math.exp %370 : vector<2x32xf32>
    %cst_111 = arith.constant 1.000000e+00 : f32
    %372 = vector.broadcast %cst_111 : f32 to vector<2x32xf32>
    %373 = arith.addf %372, %371 : vector<2x32xf32>
    %374 = arith.divf %372, %373 : vector<2x32xf32>
    %375 = arith.mulf %366, %345 : vector<2x32xf32>
    %376 = arith.mulf %360, %368 : vector<2x32xf32>
    %377 = arith.addf %375, %376 : vector<2x32xf32>
    %378 = math.tanh %377 : vector<2x32xf32>
    %379 = arith.mulf %374, %378 : vector<2x32xf32>
    %c3_112 = arith.constant 3 : index
    %c0_113 = arith.constant 0 : index
    %c0_114 = arith.constant 0 : index
    %380 = vector.load %arg16[%c3_112, %c0_113, %c0_114] : memref<8x2x32xf32, #tpu.memory_space<vmem>>, vector<1x2x32xf32>
    %381 = vector.shape_cast %380 : vector<1x2x32xf32> to vector<2x32xf32>
    %382 = vector.shape_cast %379 : vector<2x32xf32> to vector<1x2x32xf32>
    tpu.vector_store %arg16[%c3_112, %c0_113, %c0_114], %382 {strides = array<i32>} : memref<8x2x32xf32, #tpu.memory_space<vmem>>, vector<1x2x32xf32>,
    %c3_115 = arith.constant 3 : index
    %c0_116 = arith.constant 0 : index
    %c0_117 = arith.constant 0 : index
    %383 = vector.load %arg15[%c3_115, %c0_116, %c0_117] : memref<8x2x128xf32, #tpu.memory_space<vmem>>, vector<1x2x128xf32>
    %384 = vector.shape_cast %383 : vector<1x2x128xf32> to vector<2x128xf32>
    %cst_118 = arith.constant dense<0.000000e+00> : vector<2x128xf32>
    %385 = tpu.matmul %379, %251, %cst_118 {dimension_numbers = #tpu.dot_dimension_numbers<[1], [0], [0], [1], [0, 0, 1, 1], [], []>} : vector<2x32xf32>, vector<32x128xf32>, vector<2x128xf32> -> vector<2x128xf32>
    %386 = arith.addf %384, %385 : vector<2x128xf32>
    %387 = vector.extract_strided_slice %386 {offsets = [0, 0], sizes = [2, 32], strides = [1, 1]} : vector<2x128xf32> to vector<2x32xf32>
    %388 = arith.negf %387 : vector<2x32xf32>
    %389 = math.exp %388 : vector<2x32xf32>
    %cst_119 = arith.constant 1.000000e+00 : f32
    %390 = vector.broadcast %cst_119 : f32 to vector<2x32xf32>
    %391 = arith.addf %390, %389 : vector<2x32xf32>
    %392 = arith.divf %390, %391 : vector<2x32xf32>
    %393 = vector.extract_strided_slice %386 {offsets = [0, 32], sizes = [2, 32], strides = [1, 1]} : vector<2x128xf32> to vector<2x32xf32>
    %394 = arith.negf %393 : vector<2x32xf32>
    %395 = math.exp %394 : vector<2x32xf32>
    %cst_120 = arith.constant 1.000000e+00 : f32
    %396 = vector.broadcast %cst_120 : f32 to vector<2x32xf32>
    %397 = arith.addf %396, %395 : vector<2x32xf32>
    %398 = arith.divf %396, %397 : vector<2x32xf32>
    %399 = vector.extract_strided_slice %386 {offsets = [0, 64], sizes = [2, 32], strides = [1, 1]} : vector<2x128xf32> to vector<2x32xf32>
    %400 = math.tanh %399 : vector<2x32xf32>
    %401 = vector.extract_strided_slice %386 {offsets = [0, 96], sizes = [2, 32], strides = [1, 1]} : vector<2x128xf32> to vector<2x32xf32>
    %402 = arith.negf %401 : vector<2x32xf32>
    %403 = math.exp %402 : vector<2x32xf32>
    %cst_121 = arith.constant 1.000000e+00 : f32
    %404 = vector.broadcast %cst_121 : f32 to vector<2x32xf32>
    %405 = arith.addf %404, %403 : vector<2x32xf32>
    %406 = arith.divf %404, %405 : vector<2x32xf32>
    %407 = arith.mulf %398, %377 : vector<2x32xf32>
    %408 = arith.mulf %392, %400 : vector<2x32xf32>
    %409 = arith.addf %407, %408 : vector<2x32xf32>
    %410 = math.tanh %409 : vector<2x32xf32>
    %411 = arith.mulf %406, %410 : vector<2x32xf32>
    %c2_122 = arith.constant 2 : index
    %c0_123 = arith.constant 0 : index
    %c0_124 = arith.constant 0 : index
    %412 = vector.load %arg16[%c2_122, %c0_123, %c0_124] : memref<8x2x32xf32, #tpu.memory_space<vmem>>, vector<1x2x32xf32>
    %413 = vector.shape_cast %412 : vector<1x2x32xf32> to vector<2x32xf32>
    %414 = vector.shape_cast %411 : vector<2x32xf32> to vector<1x2x32xf32>
    tpu.vector_store %arg16[%c2_122, %c0_123, %c0_124], %414 {strides = array<i32>} : memref<8x2x32xf32, #tpu.memory_space<vmem>>, vector<1x2x32xf32>,
    %c2_125 = arith.constant 2 : index
    %c0_126 = arith.constant 0 : index
    %c0_127 = arith.constant 0 : index
    %415 = vector.load %arg15[%c2_125, %c0_126, %c0_127] : memref<8x2x128xf32, #tpu.memory_space<vmem>>, vector<1x2x128xf32>
    %416 = vector.shape_cast %415 : vector<1x2x128xf32> to vector<2x128xf32>
    %cst_128 = arith.constant dense<0.000000e+00> : vector<2x128xf32>
    %417 = tpu.matmul %411, %251, %cst_128 {dimension_numbers = #tpu.dot_dimension_numbers<[1], [0], [0], [1], [0, 0, 1, 1], [], []>} : vector<2x32xf32>, vector<32x128xf32>, vector<2x128xf32> -> vector<2x128xf32>
    %418 = arith.addf %416, %417 : vector<2x128xf32>
    %419 = vector.extract_strided_slice %418 {offsets = [0, 0], sizes = [2, 32], strides = [1, 1]} : vector<2x128xf32> to vector<2x32xf32>
    %420 = arith.negf %419 : vector<2x32xf32>
    %421 = math.exp %420 : vector<2x32xf32>
    %cst_129 = arith.constant 1.000000e+00 : f32
    %422 = vector.broadcast %cst_129 : f32 to vector<2x32xf32>
    %423 = arith.addf %422, %421 : vector<2x32xf32>
    %424 = arith.divf %422, %423 : vector<2x32xf32>
    %425 = vector.extract_strided_slice %418 {offsets = [0, 32], sizes = [2, 32], strides = [1, 1]} : vector<2x128xf32> to vector<2x32xf32>
    %426 = arith.negf %425 : vector<2x32xf32>
    %427 = math.exp %426 : vector<2x32xf32>
    %cst_130 = arith.constant 1.000000e+00 : f32
    %428 = vector.broadcast %cst_130 : f32 to vector<2x32xf32>
    %429 = arith.addf %428, %427 : vector<2x32xf32>
    %430 = arith.divf %428, %429 : vector<2x32xf32>
    %431 = vector.extract_strided_slice %418 {offsets = [0, 64], sizes = [2, 32], strides = [1, 1]} : vector<2x128xf32> to vector<2x32xf32>
    %432 = math.tanh %431 : vector<2x32xf32>
    %433 = vector.extract_strided_slice %418 {offsets = [0, 96], sizes = [2, 32], strides = [1, 1]} : vector<2x128xf32> to vector<2x32xf32>
    %434 = arith.negf %433 : vector<2x32xf32>
    %435 = math.exp %434 : vector<2x32xf32>
    %cst_131 = arith.constant 1.000000e+00 : f32
    %436 = vector.broadcast %cst_131 : f32 to vector<2x32xf32>
    %437 = arith.addf %436, %435 : vector<2x32xf32>
    %438 = arith.divf %436, %437 : vector<2x32xf32>
    %439 = arith.mulf %430, %409 : vector<2x32xf32>
    %440 = arith.mulf %424, %432 : vector<2x32xf32>
    %441 = arith.addf %439, %440 : vector<2x32xf32>
    %442 = math.tanh %441 : vector<2x32xf32>
    %443 = arith.mulf %438, %442 : vector<2x32xf32>
    %c1_132 = arith.constant 1 : index
    %c0_133 = arith.constant 0 : index
    %c0_134 = arith.constant 0 : index
    %444 = vector.load %arg16[%c1_132, %c0_133, %c0_134] : memref<8x2x32xf32, #tpu.memory_space<vmem>>, vector<1x2x32xf32>
    %445 = vector.shape_cast %444 : vector<1x2x32xf32> to vector<2x32xf32>
    %446 = vector.shape_cast %443 : vector<2x32xf32> to vector<1x2x32xf32>
    tpu.vector_store %arg16[%c1_132, %c0_133, %c0_134], %446 {strides = array<i32>} : memref<8x2x32xf32, #tpu.memory_space<vmem>>, vector<1x2x32xf32>,
    %c1_135 = arith.constant 1 : index
    %c0_136 = arith.constant 0 : index
    %c0_137 = arith.constant 0 : index
    %447 = vector.load %arg15[%c1_135, %c0_136, %c0_137] : memref<8x2x128xf32, #tpu.memory_space<vmem>>, vector<1x2x128xf32>
    %448 = vector.shape_cast %447 : vector<1x2x128xf32> to vector<2x128xf32>
    %cst_138 = arith.constant dense<0.000000e+00> : vector<2x128xf32>
    %449 = tpu.matmul %443, %251, %cst_138 {dimension_numbers = #tpu.dot_dimension_numbers<[1], [0], [0], [1], [0, 0, 1, 1], [], []>} : vector<2x32xf32>, vector<32x128xf32>, vector<2x128xf32> -> vector<2x128xf32>
    %450 = arith.addf %448, %449 : vector<2x128xf32>
    %451 = vector.extract_strided_slice %450 {offsets = [0, 0], sizes = [2, 32], strides = [1, 1]} : vector<2x128xf32> to vector<2x32xf32>
    %452 = arith.negf %451 : vector<2x32xf32>
    %453 = math.exp %452 : vector<2x32xf32>
    %cst_139 = arith.constant 1.000000e+00 : f32
    %454 = vector.broadcast %cst_139 : f32 to vector<2x32xf32>
    %455 = arith.addf %454, %453 : vector<2x32xf32>
    %456 = arith.divf %454, %455 : vector<2x32xf32>
    %457 = vector.extract_strided_slice %450 {offsets = [0, 32], sizes = [2, 32], strides = [1, 1]} : vector<2x128xf32> to vector<2x32xf32>
    %458 = arith.negf %457 : vector<2x32xf32>
    %459 = math.exp %458 : vector<2x32xf32>
    %cst_140 = arith.constant 1.000000e+00 : f32
    %460 = vector.broadcast %cst_140 : f32 to vector<2x32xf32>
    %461 = arith.addf %460, %459 : vector<2x32xf32>
    %462 = arith.divf %460, %461 : vector<2x32xf32>
    %463 = vector.extract_strided_slice %450 {offsets = [0, 64], sizes = [2, 32], strides = [1, 1]} : vector<2x128xf32> to vector<2x32xf32>
    %464 = math.tanh %463 : vector<2x32xf32>
    %465 = vector.extract_strided_slice %450 {offsets = [0, 96], sizes = [2, 32], strides = [1, 1]} : vector<2x128xf32> to vector<2x32xf32>
    %466 = arith.negf %465 : vector<2x32xf32>
    %467 = math.exp %466 : vector<2x32xf32>
    %cst_141 = arith.constant 1.000000e+00 : f32
    %468 = vector.broadcast %cst_141 : f32 to vector<2x32xf32>
    %469 = arith.addf %468, %467 : vector<2x32xf32>
    %470 = arith.divf %468, %469 : vector<2x32xf32>
    %471 = arith.mulf %462, %441 : vector<2x32xf32>
    %472 = arith.mulf %456, %464 : vector<2x32xf32>
    %473 = arith.addf %471, %472 : vector<2x32xf32>
    %474 = math.tanh %473 : vector<2x32xf32>
    %475 = arith.mulf %470, %474 : vector<2x32xf32>
    %c0_142 = arith.constant 0 : index
    %c0_143 = arith.constant 0 : index
    %c0_144 = arith.constant 0 : index
    %476 = vector.load %arg16[%c0_142, %c0_143, %c0_144] : memref<8x2x32xf32, #tpu.memory_space<vmem>>, vector<1x2x32xf32>
    %477 = vector.shape_cast %476 : vector<1x2x32xf32> to vector<2x32xf32>
    %478 = vector.shape_cast %475 : vector<2x32xf32> to vector<1x2x32xf32>
    tpu.vector_store %arg16[%c0_142, %c0_143, %c0_144], %478 {strides = array<i32>} : memref<8x2x32xf32, #tpu.memory_space<vmem>>, vector<1x2x32xf32>,
    %c0_145 = arith.constant 0 : index
    %c0_146 = arith.constant 0 : index
    %479 = vector.load %arg11[%c0_145, %c0_146] : memref<32x8xf32, #tpu.memory_space<vmem>>, vector<32x8xf32>
    %c0_147 = arith.constant 0 : index
    %c0_148 = arith.constant 0 : index
    %480 = vector.load %arg12[%c0_147, %c0_148] : memref<1x8xf32, #tpu.memory_space<vmem>>, vector<1x8xf32>
    %c0_149 = arith.constant 0 : index
    %c0_150 = arith.constant 0 : index
    %c0_151 = arith.constant 0 : index
    %481 = vector.load %arg16[%c0_149, %c0_150, %c0_151] : memref<8x2x32xf32, #tpu.memory_space<vmem>>, vector<8x2x32xf32>
    %482 = vector.shape_cast %481 : vector<8x2x32xf32> to vector<16x32xf32>
    %cst_152 = arith.constant dense<0.000000e+00> : vector<16x8xf32>
    %483 = tpu.matmul %482, %479, %cst_152 {dimension_numbers = #tpu.dot_dimension_numbers<[1], [0], [0], [1], [0, 0, 1, 1], [], []>} : vector<16x32xf32>, vector<32x8xf32>, vector<16x8xf32> -> vector<16x8xf32>
    %484 = vector.broadcast %480 : vector<1x8xf32> to vector<16x8xf32>
    %485 = arith.addf %483, %484 : vector<16x8xf32>
    %486 = vector.shape_cast %485 : vector<16x8xf32> to vector<8x2x8xf32>
    %c0_153 = arith.constant 0 : index
    %c0_154 = arith.constant 0 : index
    %c0_155 = arith.constant 0 : index
    %487 = vector.load %arg13[%c0_153, %c0_154, %c0_155] : memref<8x2x8xf32, #tpu.memory_space<vmem>>, vector<8x2x8xf32>
    tpu.vector_store %arg13[%c0_153, %c0_154, %c0_155], %486 {strides = array<i32>} : memref<8x2x8xf32, #tpu.memory_space<vmem>>, vector<8x2x8xf32>,
    return
  }
}

</mosaic_0001>

<llo_original>
// kernel: tpu_custom_call.1
$region0: #{tpu_custom_call.1}
  #allocation0 [shape = 'u32[]', space=smem, size = 0x4, offset = 0x4, fixed_abs, tag = 'smem constant byte address 0x4 - core index']
  #allocation1 [shape = 'u32[72,128]{1,0:T(1,128)}', space=vmem, size = 0x9000, scoped, tag = 'internal scratch']
  #allocation2 [shape = 'f32[8,2,128]{2,1,0:T(2,128)}', space=vmem, size = 0x2000, scoped, tag = 'scratch operand']
  #allocation3 [shape = 'f32[8,2,128]{2,1,0:T(2,128)}', space=vmem, size = 0x2000, scoped, tag = 'scratch operand']
  #allocation4 [shape = 'f32[8,2,32]{2,1,0:T(2,128)}', space=vmem, size = 0x2000, scoped, tag = 'scratch operand']
  %s0 = inlined_call_operand.hbm [shape: f32[8,2,8], index: 0, kind: input, shape index: {}]
  %s1 = inlined_call_operand.vmem [shape: f32[8,128], index: 1, kind: input, shape index: {}]
  %s2 = inlined_call_operand.vmem [shape: f32[32,128], index: 2, kind: input, shape index: {}]
  %s3 = inlined_call_operand.vmem [shape: f32[1,128], index: 3, kind: input, shape index: {}]
  %s4 = inlined_call_operand.hbm [shape: f32[64,128], index: 4, kind: input, shape index: {}]
  %s5 = inlined_call_operand.vmem [shape: f32[1,128], index: 5, kind: input, shape index: {}]
  %s6 = inlined_call_operand.hbm [shape: f32[8,128], index: 6, kind: input, shape index: {}]
  %s7 = inlined_call_operand.hbm [shape: f32[32,128], index: 7, kind: input, shape index: {}]
  %s8 = inlined_call_operand.hbm [shape: f32[1,128], index: 8, kind: input, shape index: {}]
  %s9 = inlined_call_operand.hbm [shape: f32[64,128], index: 9, kind: input, shape index: {}]
  %s10 = inlined_call_operand.hbm [shape: f32[1,128], index: 10, kind: input, shape index: {}]
  %s11 = inlined_call_operand.vmem [shape: f32[32,8], index: 11, kind: input, shape index: {}]
  %s12 = inlined_call_operand.vmem [shape: f32[1,8], index: 12, kind: input, shape index: {}]
  %s13 = inlined_call_operand.hbm [shape: f32[8,2,8], index: 13, kind: output, shape index: {}]
  %s14 = sld [smem:[#allocation0]]
  $region90: #{tpu_custom_call.1} parent=0
    _
  %s16 = ssub.s32 1, %s14
  %s17 = scalar_select 0, %s16, %s14
  $region1: #{tpu_custom_call.1} parent=0
    #allocation5 [shape = 'u8[8192]{0}', space=vmem, size = 0x2000, scoped, tag = 'input window, operand 0, single buffered']
    #allocation6 [shape = 's32[1]{0}', space=sflag, size = 0x4, scoped, tag = 'scoped memory for tpu_custom_call.1']
    #allocation7 [shape = 's32[1]{0}', space=sflag, size = 0x4, scoped, tag = 'scoped memory for tpu_custom_call.1']
    #allocation8 [shape = 'u8[32768]{0}', space=vmem, size = 0x8000, scoped, tag = 'input window, operand 4, single buffered']
    #allocation9 [shape = 's32[1]{0}', space=sflag, size = 0x4, scoped, tag = 'scoped memory for tpu_custom_call.1']
    #allocation10 [shape = 'u8[4096]{0}', space=vmem, size = 0x1000, scoped, tag = 'input window, operand 6, single buffered']
    #allocation11 [shape = 'u8[16384]{0}', space=vmem, size = 0x4000, scoped, tag = 'input window, operand 7, single buffered']
    #allocation12 [shape = 's32[1]{0}', space=sflag, size = 0x4, scoped, tag = 'scoped memory for tpu_custom_call.1']
    #allocation13 [shape = 'u8[512]{0}', space=vmem, size = 0x400, scoped, tag = 'input window, operand 8, single buffered']
    #allocation14 [shape = 'u8[32768]{0}', space=vmem, size = 0x8000, scoped, tag = 'input window, operand 9, single buffered']
    #allocation15 [shape = 's32[1]{0}', space=sflag, size = 0x4, scoped, tag = 'scoped memory for tpu_custom_call.1']
    #allocation16 [shape = 'u8[512]{0}', space=vmem, size = 0x400, scoped, tag = 'input window, operand 10, single buffered']
    #allocation17 [shape = 'u8[8192]{0}', space=vmem, size = 0x2000, scoped, tag = 'output window, operand 0, single buffered']
    %18 = vsyncpa [#allocation6], 0
    %19 = vsyncpa [#allocation9], 0
    %20 = vsyncpa [#allocation12], 0
    %21 = vsyncpa [#allocation15], 0
    %22 = vsyncpa [#allocation7], 0
    // Predicated region
    $region2: #{tpu_custom_call.1} parent=1 // pred_check
      _
    $region3: #{tpu_custom_call.1} parent=1 // pred_check_branch
      %24 = sbr.rel (0) target = $region5
    $region4: #{tpu_custom_call.1} parent=1 // pred_region
      %26 = vsyncadd [#allocation6], 0
      %s27 = sshll.u32 %s0, 4
      %s28 = int_to_ptr.hbm [resolvable:$true] %s27
      %s29 = sshll.u32 [#allocation5], 4
      %s30 = int_to_ptr.vmem [resolvable:$true] %s29
      %35 = dma.hbm_to_vmem [thread:$0]  %s28, 256, %s30, [#allocation6], 32, 32, 2
    $region5: #{tpu_custom_call.1} parent=1 // pred_fallthru
      _
    // Predicated region
    $region6: #{tpu_custom_call.1} parent=1 // pred_check
      _
    $region7: #{tpu_custom_call.1} parent=1 // pred_check_branch
      %37 = sbr.rel (0) target = $region9
    $region8: #{tpu_custom_call.1} parent=1 // pred_region
      _
    $region9: #{tpu_custom_call.1} parent=1 // pred_fallthru
      _
    // Predicated region
    $region10: #{tpu_custom_call.1} parent=1 // pred_check
      _
    $region11: #{tpu_custom_call.1} parent=1 // pred_check_branch
      %39 = sbr.rel (0) target = $region13
    $region12: #{tpu_custom_call.1} parent=1 // pred_region
      _
    $region13: #{tpu_custom_call.1} parent=1 // pred_fallthru
      _
    // Predicated region
    $region14: #{tpu_custom_call.1} parent=1 // pred_check
      _
    $region15: #{tpu_custom_call.1} parent=1 // pred_check_branch
      %41 = sbr.rel (0) target = $region17
    $region16: #{tpu_custom_call.1} parent=1 // pred_region
      _
    $region17: #{tpu_custom_call.1} parent=1 // pred_fallthru
      _
    // Predicated region
    $region18: #{tpu_custom_call.1} parent=1 // pred_check
      _
    $region19: #{tpu_custom_call.1} parent=1 // pred_check_branch
      %43 = sbr.rel (0) target = $region21
    $region20: #{tpu_custom_call.1} parent=1 // pred_region
      %45 = vsyncadd [#allocation9], 0
      %s46 = sshll.u32 %s4, 4
      %s47 = int_to_ptr.hbm [resolvable:$true] %s46
      %s48 = sshll.u32 [#allocation8], 4
      %s49 = int_to_ptr.vmem [resolvable:$true] %s48
      %54 = dma.hbm_to_vmem [thread:$0]  %s47, 1024, %s49, [#allocation9], 128, 128, 8
    $region21: #{tpu_custom_call.1} parent=1 // pred_fallthru
      _
    // Predicated region
    $region22: #{tpu_custom_call.1} parent=1 // pred_check
      _
    $region23: #{tpu_custom_call.1} parent=1 // pred_check_branch
      %56 = sbr.rel (0) target = $region25
    $region24: #{tpu_custom_call.1} parent=1 // pred_region
      _
    $region25: #{tpu_custom_call.1} parent=1 // pred_fallthru
      _
    // Predicated region
    $region26: #{tpu_custom_call.1} parent=1 // pred_check
      _
    $region27: #{tpu_custom_call.1} parent=1 // pred_check_branch
      %58 = sbr.rel (0) target = $region29
    $region28: #{tpu_custom_call.1} parent=1 // pred_region
      %60 = vsyncadd [#allocation9], 0
      %s62 = sshll.u32 %s6, 4
      %s63 = int_to_ptr.hbm [resolvable:$true] %s62
      %s64 = sshll.u32 [#allocation10], 4
      %s65 = int_to_ptr.vmem [resolvable:$true] %s64
      %67 = dma.hbm_to_vmem [thread:$0]  %s63, 128, %s65, [#allocation9]
    $region29: #{tpu_custom_call.1} parent=1 // pred_fallthru
      _
    // Predicated region
    $region30: #{tpu_custom_call.1} parent=1 // pred_check
      _
    $region31: #{tpu_custom_call.1} parent=1 // pred_check_branch
      %69 = sbr.rel (0) target = $region33
    $region32: #{tpu_custom_call.1} parent=1 // pred_region
      %71 = vsyncadd [#allocation12], 0
      %s72 = sshll.u32 %s7, 4
      %s73 = int_to_ptr.hbm [resolvable:$true] %s72
      %s74 = sshll.u32 [#allocation11], 4
      %s75 = int_to_ptr.vmem [resolvable:$true] %s74
      %80 = dma.hbm_to_vmem [thread:$0]  %s73, 512, %s75, [#allocation12], 128, 128, 8
    $region33: #{tpu_custom_call.1} parent=1 // pred_fallthru
      _
    // Predicated region
    $region34: #{tpu_custom_call.1} parent=1 // pred_check
      _
    $region35: #{tpu_custom_call.1} parent=1 // pred_check_branch
      %82 = sbr.rel (0) target = $region37
    $region36: #{tpu_custom_call.1} parent=1 // pred_region
      %84 = vsyncadd [#allocation12], 0
      %s86 = sshll.u32 %s8, 4
      %s87 = int_to_ptr.hbm [resolvable:$true] %s86
      %s88 = sshll.u32 [#allocation13], 4
      %s89 = int_to_ptr.vmem [resolvable:$true] %s88
      %91 = dma.hbm_to_vmem [thread:$0]  %s87, 16, %s89, [#allocation12]
    $region37: #{tpu_custom_call.1} parent=1 // pred_fallthru
      _
    // Predicated region
    $region38: #{tpu_custom_call.1} parent=1 // pred_check
      _
    $region39: #{tpu_custom_call.1} parent=1 // pred_check_branch
      %93 = sbr.rel (0) target = $region41
    $region40: #{tpu_custom_call.1} parent=1 // pred_region
      %95 = vsyncadd [#allocation15], 0
      %s96 = sshll.u32 %s9, 4
      %s97 = int_to_ptr.hbm [resolvable:$true] %s96
      %s98 = sshll.u32 [#allocation14], 4
      %s99 = int_to_ptr.vmem [resolvable:$true] %s98
      %104 = dma.hbm_to_vmem [thread:$0]  %s97, 1024, %s99, [#allocation15], 128, 128, 8
    $region41: #{tpu_custom_call.1} parent=1 // pred_fallthru
      _
    // Predicated region
    $region42: #{tpu_custom_call.1} parent=1 // pred_check
      _
    $region43: #{tpu_custom_call.1} parent=1 // pred_check_branch
      %106 = sbr.rel (0) target = $region45
    $region44: #{tpu_custom_call.1} parent=1 // pred_region
      %108 = vsyncadd [#allocation15], 0
      %s110 = sshll.u32 %s10, 4
      %s111 = int_to_ptr.hbm [resolvable:$true] %s110
      %s112 = sshll.u32 [#allocation16], 4
      %s113 = int_to_ptr.vmem [resolvable:$true] %s112
      %115 = dma.hbm_to_vmem [thread:$0]  %s111, 16, %s113, [#allocation15]
    $region45: #{tpu_custom_call.1} parent=1 // pred_fallthru
      _
    // Predicated region
    $region46: #{tpu_custom_call.1} parent=1 // pred_check
      _
    $region47: #{tpu_custom_call.1} parent=1 // pred_check_branch
      %117 = sbr.rel (0) target = $region49
    $region48: #{tpu_custom_call.1} parent=1 // pred_region
      _
    $region49: #{tpu_custom_call.1} parent=1 // pred_fallthru
      _
    // Predicated region
    $region50: #{tpu_custom_call.1} parent=1 // pred_check
      _
    $region51: #{tpu_custom_call.1} parent=1 // pred_check_branch
      %119 = sbr.rel (0) target = $region53
    $region52: #{tpu_custom_call.1} parent=1 // pred_region
      _
    $region53: #{tpu_custom_call.1} parent=1 // pred_fallthru
      _
    // Predicated region
    $region54: #{tpu_custom_call.1} parent=1 // pred_check
      _
    $region55: #{tpu_custom_call.1} parent=1 // pred_check_branch
      %121 = sbr.rel (0) target = $region57
    $region56: #{tpu_custom_call.1} parent=1 // pred_region
      %123 = dma.done [#allocation6], 256
    $region57: #{tpu_custom_call.1} parent=1 // pred_fallthru
      _
    // Predicated region
    $region58: #{tpu_custom_call.1} parent=1 // pred_check
      _
    $region59: #{tpu_custom_call.1} parent=1 // pred_check_branch
      %125 = sbr.rel (0) target = $region61
    $region60: #{tpu_custom_call.1} parent=1 // pred_region
      %127 = dma.done [#allocation9], 1024
    $region61: #{tpu_custom_call.1} parent=1 // pred_fallthru
      _
    // Predicated region
    $region62: #{tpu_custom_call.1} parent=1 // pred_check
      _
    $region63: #{tpu_custom_call.1} parent=1 // pred_check_branch
      %129 = sbr.rel (0) target = $region65
    $region64: #{tpu_custom_call.1} parent=1 // pred_region
      %131 = dma.done [#allocation9], 128
    $region65: #{tpu_custom_call.1} parent=1 // pred_fallthru
      _
    // Predicated region
    $region66: #{tpu_custom_call.1} parent=1 // pred_check
      _
    $region67: #{tpu_custom_call.1} parent=1 // pred_check_branch
      %133 = sbr.rel (0) target = $region69
    $region68: #{tpu_custom_call.1} parent=1 // pred_region
      %135 = dma.done [#allocation12], 512
    $region69: #{tpu_custom_call.1} parent=1 // pred_fallthru
      _
    // Predicated region
    $region70: #{tpu_custom_call.1} parent=1 // pred_check
      _
    $region71: #{tpu_custom_call.1} parent=1 // pred_check_branch
      %137 = sbr.rel (0) target = $region73
    $region72: #{tpu_custom_call.1} parent=1 // pred_region
      %139 = dma.done [#allocation12], 16
    $region73: #{tpu_custom_call.1} parent=1 // pred_fallthru
      _
    // Predicated region
    $region74: #{tpu_custom_call.1} parent=1 // pred_check
      _
    $region75: #{tpu_custom_call.1} parent=1 // pred_check_branch
      %141 = sbr.rel (0) target = $region77
    $region76: #{tpu_custom_call.1} parent=1 // pred_region
      %143 = dma.done [#allocation15], 1024
    $region77: #{tpu_custom_call.1} parent=1 // pred_fallthru
      _
    // Predicated region
    $region78: #{tpu_custom_call.1} parent=1 // pred_check
      _
    $region79: #{tpu_custom_call.1} parent=1 // pred_check_branch
      %145 = sbr.rel (0) target = $region81
    $region80: #{tpu_custom_call.1} parent=1 // pred_region
      %147 = dma.done [#allocation15], 16
    $region81: #{tpu_custom_call.1} parent=1 // pred_fallthru
      _
    %v148 = vld [vmem:[#allocation5] sm:$0x3]
    %v149 = vld [vmem:[#allocation5 + $0x2] sm:$0x3]
    %v150 = vld [vmem:[#allocation5 + $0x4] sm:$0x3]
    %v151 = vld [vmem:[#allocation5 + $0x6] sm:$0x3]
    %v152 = vld [vmem:[#allocation5 + $0x8] sm:$0x3]
    %v153 = vld [vmem:[#allocation5 + $0xa] sm:$0x3]
    %v154 = vld [vmem:[#allocation5 + $0xc] sm:$0x3]
    %v155 = vld [vmem:[#allocation5 + $0xe] sm:$0x3]
    %v156 = vld [vmem:[%s1] sm:$0xff]
    %v157 = vld [vmem:[%s3] sm:$0x1]
    %v159 = vperm.slane %v157, 0
    %169 = vst [vmem:[#allocation1] ss:$4 sm:$0xff] %v148
    %s170 = scalar_lea.vmem [#allocation1], 1
    %171 = vst [vmem:[%s170] ss:$4 sm:$0xff] %v149
    %s172 = scalar_lea.vmem [#allocation1], 2
    %173 = vst [vmem:[%s172] ss:$4 sm:$0xff] %v150
    %s174 = scalar_lea.vmem [#allocation1], 3
    %175 = vst [vmem:[%s174] ss:$4 sm:$0xff] %v151
    %s176 = scalar_lea.vmem [#allocation1], 32
    %177 = vst [vmem:[%s176] ss:$4 sm:$0xff] %v152
    %s178 = scalar_lea.vmem [#allocation1], 33
    %179 = vst [vmem:[%s178] ss:$4 sm:$0xff] %v153
    %s180 = scalar_lea.vmem [#allocation1], 34
    %181 = vst [vmem:[%s180] ss:$4 sm:$0xff] %v154
    %s182 = scalar_lea.vmem [#allocation1], 35
    %183 = vst [vmem:[%s182] ss:$4 sm:$0xff] %v155
    %v184 = vld.sshfl [vmem:[#allocation1] sm:$0xff pattern:$0x73625140]
    %v185 = vld.sshfl [vmem:[#allocation1 + $0x20] sm:$0xff pattern:$0x73625140]
    %vm186 = vcmask 64512
    %v187 = vsel %vm186, %v184, 0
    %v189 = vsel %vm186, %v185, 0
    %191 = vmatpush.msra.mxu0 0.0
    %192 = vmatpush.msra.mxu0 0.0
    %193 = vmatpush.msra.mxu0 0.0
    %194 = vmatpush.msra.mxu0 0.0
    %195 = vmatpush.msra.mxu0 0.0
    %196 = vmatpush.msra.mxu0 0.0
    %197 = vmatpush.msra.mxu0 0.0
    %198 = vmatpush.msra.mxu0 0.0
    %199 = vmatpush.msra.mxu0 0.0
    %200 = vmatpush.msra.mxu0 0.0
    %201 = vmatpush.msra.mxu0 0.0
    %202 = vmatpush.msra.mxu0 0.0
    %203 = vmatpush.msra.mxu0 0.0
    %204 = vmatpush.msra.mxu0 0.0
    %205 = vmatpush.msra.mxu0 0.0
    %206 = vmatpush.msra.mxu0 %v156
    %207 = vmatmul.f32.gmra.mxu0 %v187
    %v208 = vpop.f32.mrf.mxu0
    %v209 = vadd.f32 %v159, %v208
    %210 = vmatmul.f32.gmra.mxu0 %v189
    %v211 = vpop.f32.mrf.mxu0
    %v212 = vadd.f32 %v159, %v211
    %213 = vdwg.mxu0
    %v216 = vrot.slane %v209, 2
    %v217 = vrot.slane %v209, 4
    %v218 = vrot.slane %v209, 6
    %v219 = vrot.slane %v212, 2
    %v220 = vrot.slane %v212, 4
    %v221 = vrot.slane %v212, 6
    %228 = vst [vmem:[#allocation2] sm:$0x3] %v209
    %229 = vst [vmem:[#allocation2 + $0x2] sm:$0x3] %v216
    %230 = vst [vmem:[#allocation2 + $0x4] sm:$0x3] %v217
    %231 = vst [vmem:[#allocation2 + $0x6] sm:$0x3] %v218
    %232 = vst [vmem:[#allocation2 + $0x8] sm:$0x3] %v212
    %233 = vst [vmem:[#allocation2 + $0xa] sm:$0x3] %v219
    %234 = vst [vmem:[#allocation2 + $0xc] sm:$0x3] %v220
    %235 = vst [vmem:[#allocation2 + $0xe] sm:$0x3] %v221
    %v236 = vld [vmem:[#allocation10] sm:$0xff]
    %v237 = vld [vmem:[#allocation13] sm:$0x1]
    %v239 = vperm.slane %v237, 0
    %241 = vst [vmem:[#allocation1] ss:$4 sm:$0xff] %v148
    %s242 = scalar_lea.vmem [#allocation1], 1
    %243 = vst [vmem:[%s242] ss:$4 sm:$0xff] %v149
    %s244 = scalar_lea.vmem [#allocation1], 2
    %245 = vst [vmem:[%s244] ss:$4 sm:$0xff] %v150
    %s246 = scalar_lea.vmem [#allocation1], 3
    %247 = vst [vmem:[%s246] ss:$4 sm:$0xff] %v151
    %s248 = scalar_lea.vmem [#allocation1], 32
    %249 = vst [vmem:[%s248] ss:$4 sm:$0xff] %v152
    %s250 = scalar_lea.vmem [#allocation1], 33
    %251 = vst [vmem:[%s250] ss:$4 sm:$0xff] %v153
    %s252 = scalar_lea.vmem [#allocation1], 34
    %253 = vst [vmem:[%s252] ss:$4 sm:$0xff] %v154
    %s254 = scalar_lea.vmem [#allocation1], 35
    %255 = vst [vmem:[%s254] ss:$4 sm:$0xff] %v155
    %v256 = vld.sshfl [vmem:[#allocation1] sm:$0xff pattern:$0x73625140]
    %v257 = vld.sshfl [vmem:[#allocation1 + $0x20] sm:$0xff pattern:$0x73625140]
    %v258 = vsel %vm186, %v256, 0
    %v260 = vsel %vm186, %v257, 0
    %262 = vmatpush.msra.mxu0 0.0
    %263 = vmatpush.msra.mxu0 0.0
    %264 = vmatpush.msra.mxu0 0.0
    %265 = vmatpush.msra.mxu0 0.0
    %266 = vmatpush.msra.mxu0 0.0
    %267 = vmatpush.msra.mxu0 0.0
    %268 = vmatpush.msra.mxu0 0.0
    %269 = vmatpush.msra.mxu0 0.0
    %270 = vmatpush.msra.mxu0 0.0
    %271 = vmatpush.msra.mxu0 0.0
    %272 = vmatpush.msra.mxu0 0.0
    %273 = vmatpush.msra.mxu0 0.0
    %274 = vmatpush.msra.mxu0 0.0
    %275 = vmatpush.msra.mxu0 0.0
    %276 = vmatpush.msra.mxu0 0.0
    %277 = vmatpush.msra.mxu0 %v236
    %278 = vmatmul.f32.gmra.mxu0 %v258
    %v279 = vpop.f32.mrf.mxu0
    %v280 = vadd.f32 %v239, %v279
    %281 = vmatmul.f32.gmra.mxu0 %v260
    %v282 = vpop.f32.mrf.mxu0
    %v283 = vadd.f32 %v239, %v282
    %284 = vdwg.mxu0
    %v287 = vrot.slane %v280, 2
    %v288 = vrot.slane %v280, 4
    %v289 = vrot.slane %v280, 6
    %v290 = vrot.slane %v283, 2
    %v291 = vrot.slane %v283, 4
    %v292 = vrot.slane %v283, 6
    %299 = vst [vmem:[#allocation3] sm:$0x3] %v280
    %300 = vst [vmem:[#allocation3 + $0x2] sm:$0x3] %v287
    %301 = vst [vmem:[#allocation3 + $0x4] sm:$0x3] %v288
    %302 = vst [vmem:[#allocation3 + $0x6] sm:$0x3] %v289
    %303 = vst [vmem:[#allocation3 + $0x8] sm:$0x3] %v283
    %304 = vst [vmem:[#allocation3 + $0xa] sm:$0x3] %v290
    %305 = vst [vmem:[#allocation3 + $0xc] sm:$0x3] %v291
    %306 = vst [vmem:[#allocation3 + $0xe] sm:$0x3] %v292
    %v307 = vld [vmem:[%s2] sm:$0xff]
    %v308 = vld [vmem:[%s2 + $0x8] sm:$0xff]
    %v309 = vld [vmem:[%s2 + $0x10] sm:$0xff]
    %v310 = vld [vmem:[%s2 + $0x18] sm:$0xff]
    %v311 = vld [vmem:[#allocation2] sm:$0x3]
    %vm312 = vcmask 261120
    %v314 = vsel %vm312, 0.0, 0
    %316 = vmatpush.msra.mxu0 0.0
    %317 = vmatpush.msra.mxu0 0.0
    %318 = vmatpush.msra.mxu0 0.0
    %319 = vmatpush.msra.mxu0 0.0
    %320 = vmatpush.msra.mxu0 0.0
    %321 = vmatpush.msra.mxu0 0.0
    %322 = vmatpush.msra.mxu0 0.0
    %323 = vmatpush.msra.mxu0 0.0
    %324 = vmatpush.msra.mxu0 0.0
    %325 = vmatpush.msra.mxu0 0.0
    %326 = vmatpush.msra.mxu0 0.0
    %327 = vmatpush.msra.mxu0 0.0
    %328 = vmatpush.msra.mxu0 %v310
    %329 = vmatpush.msra.mxu0 %v309
    %330 = vmatpush.msra.mxu0 %v308
    %331 = vmatpush.msra.mxu0 %v307
    %332 = vmatmul.f32.gmra.mxu0 %v314
    %v333 = vpop.f32.mrf.mxu0
    %v334 = vadd.f32 0.0, %v333
    %335 = vdwg.mxu0
    %v336 = vadd.f32 %v311, %v334
    %v337 = vxor.u32 %v336, 2147483648
    %v338 = vmul.f32 %v337, 1.442695
    %v339 = vpow.pop %v338
    %v340 = vadd.f32 %v339, 1.0
    %v341 = vrcp.pop %v340
    %v342 = vmul.f32 %v340, %v341
    %v343 = vsub.f32 1.0, %v342
    %v344 = vmul.f32 %v341, %v343
    %v345 = vadd.f32 %v341, %v344
    %vm346 = vweird.f32 %v340
    %vm347 = vweird.f32 %v341
    %vm348 = vmor %vm346, %vm347
    %v349 = vsel %vm348, %v341, %v345
    %v350 = vand.u32 2147483647, %v340
    %vm351 = vcmp.eq.f32.partialorder %v350, 8.507059e+37
    %v352 = vand.u32 %v340, 2147483648
    %v353 = vor.u32 1.1754944e-38, %v352
    %v354 = vsel %vm351, %v353, %v349
    %v355 = vmul.f32 1.0, %v354
    %v356 = vtanh.pop %v336
    %v357 = vmul.f32 %v355, 0.0
    %359 = vrot.lane.b32.xlu0 %v356, 64
    %v360 = vpop.permute.xlu0 %359
    %v362 = vmul.f32 %v355, %v360
    %364 = vrot.lane.b32.xlu0 %v362, 32
    %v365 = vpop.permute.xlu0 %364
    %v367 = vadd.f32 %v357, %v365
    %v368 = vtanh.pop %v367
    %370 = vrot.lane.b32.xlu0 %v368, 64
    %v371 = vpop.permute.xlu0 %370
    %v373 = vmul.f32 %v355, %v371
    %s374 = scalar_lea.vmem [#allocation2], 2
    %v375 = vld [vmem:[%s374] sm:$0x3]
    %377 = vrot.lane.b32.xlu0 %v373, 32
    %v378 = vpop.permute.xlu0 %377
    %v379 = vsel %vm312, %v378, 0
    %381 = vmatpush.msra.mxu0 0.0
    %382 = vmatpush.msra.mxu0 0.0
    %383 = vmatpush.msra.mxu0 0.0
    %384 = vmatpush.msra.mxu0 0.0
    %385 = vmatpush.msra.mxu0 0.0
    %386 = vmatpush.msra.mxu0 0.0
    %387 = vmatpush.msra.mxu0 0.0
    %388 = vmatpush.msra.mxu0 0.0
    %389 = vmatpush.msra.mxu0 0.0
    %390 = vmatpush.msra.mxu0 0.0
    %391 = vmatpush.msra.mxu0 0.0
    %392 = vmatpush.msra.mxu0 0.0
    %393 = vmatpush.msra.mxu0 %v310
    %394 = vmatpush.msra.mxu0 %v309
    %395 = vmatpush.msra.mxu0 %v308
    %396 = vmatpush.msra.mxu0 %v307
    %397 = vmatmul.f32.gmra.mxu0 %v379
    %v398 = vpop.f32.mrf.mxu0
    %v399 = vadd.f32 0.0, %v398
    %400 = vdwg.mxu0
    %v401 = vadd.f32 %v375, %v399
    %v402 = vxor.u32 %v401, 2147483648
    %v403 = vmul.f32 %v402, 1.442695
    %v404 = vpow.pop %v403
    %v405 = vadd.f32 %v404, 1.0
    %v406 = vrcp.pop %v405
    %v407 = vmul.f32 %v405, %v406
    %v408 = vsub.f32 1.0, %v407
    %v409 = vmul.f32 %v406, %v408
    %v410 = vadd.f32 %v406, %v409
    %vm411 = vweird.f32 %v405
    %vm412 = vweird.f32 %v406
    %vm413 = vmor %vm411, %vm412
    %v414 = vsel %vm413, %v406, %v410
    %v415 = vand.u32 2147483647, %v405
    %vm416 = vcmp.eq.f32.partialorder %v415, 8.507059e+37
    %v417 = vand.u32 %v405, 2147483648
    %v418 = vor.u32 1.1754944e-38, %v417
    %v419 = vsel %vm416, %v418, %v414
    %v420 = vmul.f32 1.0, %v419
    %v421 = vtanh.pop %v401
    %v422 = vmul.f32 %v420, %v367
    %424 = vrot.lane.b32.xlu0 %v421, 64
    %v425 = vpop.permute.xlu0 %424
    %v427 = vmul.f32 %v420, %v425
    %429 = vrot.lane.b32.xlu0 %v427, 32
    %v430 = vpop.permute.xlu0 %429
    %v432 = vadd.f32 %v422, %v430
    %v433 = vtanh.pop %v432
    %435 = vrot.lane.b32.xlu0 %v433, 64
    %v436 = vpop.permute.xlu0 %435
    %v438 = vmul.f32 %v420, %v436
    %s439 = scalar_lea.vmem [#allocation2], 4
    %v440 = vld [vmem:[%s439] sm:$0x3]
    %442 = vrot.lane.b32.xlu0 %v438, 32
    %v443 = vpop.permute.xlu0 %442
    %v444 = vsel %vm312, %v443, 0
    %446 = vmatpush.msra.mxu0 0.0
    %447 = vmatpush.msra.mxu0 0.0
    %448 = vmatpush.msra.mxu0 0.0
    %449 = vmatpush.msra.mxu0 0.0
    %450 = vmatpush.msra.mxu0 0.0
    %451 = vmatpush.msra.mxu0 0.0
    %452 = vmatpush.msra.mxu0 0.0
    %453 = vmatpush.msra.mxu0 0.0
    %454 = vmatpush.msra.mxu0 0.0
    %455 = vmatpush.msra.mxu0 0.0
    %456 = vmatpush.msra.mxu0 0.0
    %457 = vmatpush.msra.mxu0 0.0
    %458 = vmatpush.msra.mxu0 %v310
    %459 = vmatpush.msra.mxu0 %v309
    %460 = vmatpush.msra.mxu0 %v308
    %461 = vmatpush.msra.mxu0 %v307
    %462 = vmatmul.f32.gmra.mxu0 %v444
    %v463 = vpop.f32.mrf.mxu0
    %v464 = vadd.f32 0.0, %v463
    %465 = vdwg.mxu0
    %v466 = vadd.f32 %v440, %v464
    %v467 = vxor.u32 %v466, 2147483648
    %v468 = vmul.f32 %v467, 1.442695
    %v469 = vpow.pop %v468
    %v470 = vadd.f32 %v469, 1.0
    %v471 = vrcp.pop %v470
    %v472 = vmul.f32 %v470, %v471
    %v473 = vsub.f32 1.0, %v472
    %v474 = vmul.f32 %v471, %v473
    %v475 = vadd.f32 %v471, %v474
    %vm476 = vweird.f32 %v470
    %vm477 = vweird.f32 %v471
    %vm478 = vmor %vm476, %vm477
    %v479 = vsel %vm478, %v471, %v475
    %v480 = vand.u32 2147483647, %v470
    %vm481 = vcmp.eq.f32.partialorder %v480, 8.507059e+37
    %v482 = vand.u32 %v470, 2147483648
    %v483 = vor.u32 1.1754944e-38, %v482
    %v484 = vsel %vm481, %v483, %v479
    %v485 = vmul.f32 1.0, %v484
    %v486 = vtanh.pop %v466
    %v487 = vmul.f32 %v485, %v432
    %489 = vrot.lane.b32.xlu0 %v486, 64
    %v490 = vpop.permute.xlu0 %489
    %v492 = vmul.f32 %v485, %v490
    %494 = vrot.lane.b32.xlu0 %v492, 32
    %v495 = vpop.permute.xlu0 %494
    %v497 = vadd.f32 %v487, %v495
    %v498 = vtanh.pop %v497
    %500 = vrot.lane.b32.xlu0 %v498, 64
    %v501 = vpop.permute.xlu0 %500
    %v503 = vmul.f32 %v485, %v501
    %s504 = scalar_lea.vmem [#allocation2], 6
    %v505 = vld [vmem:[%s504] sm:$0x3]
    %507 = vrot.lane.b32.xlu0 %v503, 32
    %v508 = vpop.permute.xlu0 %507
    %v509 = vsel %vm312, %v508, 0
    %511 = vmatpush.msra.mxu0 0.0
    %512 = vmatpush.msra.mxu0 0.0
    %513 = vmatpush.msra.mxu0 0.0
    %514 = vmatpush.msra.mxu0 0.0
    %515 = vmatpush.msra.mxu0 0.0
    %516 = vmatpush.msra.mxu0 0.0
    %517 = vmatpush.msra.mxu0 0.0
    %518 = vmatpush.msra.mxu0 0.0
    %519 = vmatpush.msra.mxu0 0.0
    %520 = vmatpush.msra.mxu0 0.0
    %521 = vmatpush.msra.mxu0 0.0
    %522 = vmatpush.msra.mxu0 0.0
    %523 = vmatpush.msra.mxu0 %v310
    %524 = vmatpush.msra.mxu0 %v309
    %525 = vmatpush.msra.mxu0 %v308
    %526 = vmatpush.msra.mxu0 %v307
    %527 = vmatmul.f32.gmra.mxu0 %v509
    %v528 = vpop.f32.mrf.mxu0
    %v529 = vadd.f32 0.0, %v528
    %530 = vdwg.mxu0
    %v531 = vadd.f32 %v505, %v529
    %v532 = vxor.u32 %v531, 2147483648
    %v533 = vmul.f32 %v532, 1.442695
    %v534 = vpow.pop %v533
    %v535 = vadd.f32 %v534, 1.0
    %v536 = vrcp.pop %v535
    %v537 = vmul.f32 %v535, %v536
    %v538 = vsub.f32 1.0, %v537
    %v539 = vmul.f32 %v536, %v538
    %v540 = vadd.f32 %v536, %v539
    %vm541 = vweird.f32 %v535
    %vm542 = vweird.f32 %v536
    %vm543 = vmor %vm541, %vm542
    %v544 = vsel %vm543, %v536, %v540
    %v545 = vand.u32 2147483647, %v535
    %vm546 = vcmp.eq.f32.partialorder %v545, 8.507059e+37
    %v547 = vand.u32 %v535, 2147483648
    %v548 = vor.u32 1.1754944e-38, %v547
    %v549 = vsel %vm546, %v548, %v544
    %v550 = vmul.f32 1.0, %v549
    %v551 = vtanh.pop %v531
    %v552 = vmul.f32 %v550, %v497
    %554 = vrot.lane.b32.xlu0 %v551, 64
    %v555 = vpop.permute.xlu0 %554
    %v557 = vmul.f32 %v550, %v555
    %559 = vrot.lane.b32.xlu0 %v557, 32
    %v560 = vpop.permute.xlu0 %559
    %v562 = vadd.f32 %v552, %v560
    %v563 = vtanh.pop %v562
    %565 = vrot.lane.b32.xlu0 %v563, 64
    %v566 = vpop.permute.xlu0 %565
    %v568 = vmul.f32 %v550, %v566
    %s569 = scalar_lea.vmem [#allocation2], 8
    %v570 = vld [vmem:[%s569] sm:$0x3]
    %572 = vrot.lane.b32.xlu0 %v568, 32
    %v573 = vpop.permute.xlu0 %572
    %v574 = vsel %vm312, %v573, 0
    %576 = vmatpush.msra.mxu0 0.0
    %577 = vmatpush.msra.mxu0 0.0
    %578 = vmatpush.msra.mxu0 0.0
    %579 = vmatpush.msra.mxu0 0.0
    %580 = vmatpush.msra.mxu0 0.0
    %581 = vmatpush.msra.mxu0 0.0
    %582 = vmatpush.msra.mxu0 0.0
    %583 = vmatpush.msra.mxu0 0.0
    %584 = vmatpush.msra.mxu0 0.0
    %585 = vmatpush.msra.mxu0 0.0
    %586 = vmatpush.msra.mxu0 0.0
    %587 = vmatpush.msra.mxu0 0.0
    %588 = vmatpush.msra.mxu0 %v310
    %589 = vmatpush.msra.mxu0 %v309
    %590 = vmatpush.msra.mxu0 %v308
    %591 = vmatpush.msra.mxu0 %v307
    %592 = vmatmul.f32.gmra.mxu0 %v574
    %v593 = vpop.f32.mrf.mxu0
    %v594 = vadd.f32 0.0, %v593
    %595 = vdwg.mxu0
    %v596 = vadd.f32 %v570, %v594
    %v597 = vxor.u32 %v596, 2147483648
    %v598 = vmul.f32 %v597, 1.442695
    %v599 = vpow.pop %v598
    %v600 = vadd.f32 %v599, 1.0
    %v601 = vrcp.pop %v600
    %v602 = vmul.f32 %v600, %v601
    %v603 = vsub.f32 1.0, %v602
    %v604 = vmul.f32 %v601, %v603
    %v605 = vadd.f32 %v601, %v604
    %vm606 = vweird.f32 %v600
    %vm607 = vweird.f32 %v601
    %vm608 = vmor %vm606, %vm607
    %v609 = vsel %vm608, %v601, %v605
    %v610 = vand.u32 2147483647, %v600
    %vm611 = vcmp.eq.f32.partialorder %v610, 8.507059e+37
    %v612 = vand.u32 %v600, 2147483648
    %v613 = vor.u32 1.1754944e-38, %v612
    %v614 = vsel %vm611, %v613, %v609
    %v615 = vmul.f32 1.0, %v614
    %v616 = vtanh.pop %v596
    %v617 = vmul.f32 %v615, %v562
    %619 = vrot.lane.b32.xlu0 %v616, 64
    %v620 = vpop.permute.xlu0 %619
    %v622 = vmul.f32 %v615, %v620
    %624 = vrot.lane.b32.xlu0 %v622, 32
    %v625 = vpop.permute.xlu0 %624
    %v627 = vadd.f32 %v617, %v625
    %v628 = vtanh.pop %v627
    %630 = vrot.lane.b32.xlu0 %v628, 64
    %v631 = vpop.permute.xlu0 %630
    %v633 = vmul.f32 %v615, %v631
    %s634 = scalar_lea.vmem [#allocation2], 10
    %v635 = vld [vmem:[%s634] sm:$0x3]
    %637 = vrot.lane.b32.xlu0 %v633, 32
    %v638 = vpop.permute.xlu0 %637
    %v639 = vsel %vm312, %v638, 0
    %641 = vmatpush.msra.mxu0 0.0
    %642 = vmatpush.msra.mxu0 0.0
    %643 = vmatpush.msra.mxu0 0.0
    %644 = vmatpush.msra.mxu0 0.0
    %645 = vmatpush.msra.mxu0 0.0
    %646 = vmatpush.msra.mxu0 0.0
    %647 = vmatpush.msra.mxu0 0.0
    %648 = vmatpush.msra.mxu0 0.0
    %649 = vmatpush.msra.mxu0 0.0
    %650 = vmatpush.msra.mxu0 0.0
    %651 = vmatpush.msra.mxu0 0.0
    %652 = vmatpush.msra.mxu0 0.0
    %653 = vmatpush.msra.mxu0 %v310
    %654 = vmatpush.msra.mxu0 %v309
    %655 = vmatpush.msra.mxu0 %v308
    %656 = vmatpush.msra.mxu0 %v307
    %657 = vmatmul.f32.gmra.mxu0 %v639
    %v658 = vpop.f32.mrf.mxu0
    %v659 = vadd.f32 0.0, %v658
    %660 = vdwg.mxu0
    %v661 = vadd.f32 %v635, %v659
    %v662 = vxor.u32 %v661, 2147483648
    %v663 = vmul.f32 %v662, 1.442695
    %v664 = vpow.pop %v663
    %v665 = vadd.f32 %v664, 1.0
    %v666 = vrcp.pop %v665
    %v667 = vmul.f32 %v665, %v666
    %v668 = vsub.f32 1.0, %v667
    %v669 = vmul.f32 %v666, %v668
    %v670 = vadd.f32 %v666, %v669
    %vm671 = vweird.f32 %v665
    %vm672 = vweird.f32 %v666
    %vm673 = vmor %vm671, %vm672
    %v674 = vsel %vm673, %v666, %v670
    %v675 = vand.u32 2147483647, %v665
    %vm676 = vcmp.eq.f32.partialorder %v675, 8.507059e+37
    %v677 = vand.u32 %v665, 2147483648
    %v678 = vor.u32 1.1754944e-38, %v677
    %v679 = vsel %vm676, %v678, %v674
    %v680 = vmul.f32 1.0, %v679
    %v681 = vtanh.pop %v661
    %v682 = vmul.f32 %v680, %v627
    %684 = vrot.lane.b32.xlu0 %v681, 64
    %v685 = vpop.permute.xlu0 %684
    %v687 = vmul.f32 %v680, %v685
    %689 = vrot.lane.b32.xlu0 %v687, 32
    %v690 = vpop.permute.xlu0 %689
    %v692 = vadd.f32 %v682, %v690
    %v693 = vtanh.pop %v692
    %695 = vrot.lane.b32.xlu0 %v693, 64
    %v696 = vpop.permute.xlu0 %695
    %v698 = vmul.f32 %v680, %v696
    %s699 = scalar_lea.vmem [#allocation2], 12
    %v700 = vld [vmem:[%s699] sm:$0x3]
    %702 = vrot.lane.b32.xlu0 %v698, 32
    %v703 = vpop.permute.xlu0 %702
    %v704 = vsel %vm312, %v703, 0
    %706 = vmatpush.msra.mxu0 0.0
    %707 = vmatpush.msra.mxu0 0.0
    %708 = vmatpush.msra.mxu0 0.0
    %709 = vmatpush.msra.mxu0 0.0
    %710 = vmatpush.msra.mxu0 0.0
    %711 = vmatpush.msra.mxu0 0.0
    %712 = vmatpush.msra.mxu0 0.0
    %713 = vmatpush.msra.mxu0 0.0
    %714 = vmatpush.msra.mxu0 0.0
    %715 = vmatpush.msra.mxu0 0.0
    %716 = vmatpush.msra.mxu0 0.0
    %717 = vmatpush.msra.mxu0 0.0
    %718 = vmatpush.msra.mxu0 %v310
    %719 = vmatpush.msra.mxu0 %v309
    %720 = vmatpush.msra.mxu0 %v308
    %721 = vmatpush.msra.mxu0 %v307
    %722 = vmatmul.f32.gmra.mxu0 %v704
    %v723 = vpop.f32.mrf.mxu0
    %v724 = vadd.f32 0.0, %v723
    %725 = vdwg.mxu0
    %v726 = vadd.f32 %v700, %v724
    %v727 = vxor.u32 %v726, 2147483648
    %v728 = vmul.f32 %v727, 1.442695
    %v729 = vpow.pop %v728
    %v730 = vadd.f32 %v729, 1.0
    %v731 = vrcp.pop %v730
    %v732 = vmul.f32 %v730, %v731
    %v733 = vsub.f32 1.0, %v732
    %v734 = vmul.f32 %v731, %v733
    %v735 = vadd.f32 %v731, %v734
    %vm736 = vweird.f32 %v730
    %vm737 = vweird.f32 %v731
    %vm738 = vmor %vm736, %vm737
    %v739 = vsel %vm738, %v731, %v735
    %v740 = vand.u32 2147483647, %v730
    %vm741 = vcmp.eq.f32.partialorder %v740, 8.507059e+37
    %v742 = vand.u32 %v730, 2147483648
    %v743 = vor.u32 1.1754944e-38, %v742
    %v744 = vsel %vm741, %v743, %v739
    %v745 = vmul.f32 1.0, %v744
    %v746 = vtanh.pop %v726
    %v747 = vmul.f32 %v745, %v692
    %749 = vrot.lane.b32.xlu0 %v746, 64
    %v750 = vpop.permute.xlu0 %749
    %v752 = vmul.f32 %v745, %v750
    %754 = vrot.lane.b32.xlu0 %v752, 32
    %v755 = vpop.permute.xlu0 %754
    %v757 = vadd.f32 %v747, %v755
    %v758 = vtanh.pop %v757
    %760 = vrot.lane.b32.xlu0 %v758, 64
    %v761 = vpop.permute.xlu0 %760
    %v763 = vmul.f32 %v745, %v761
    %s764 = scalar_lea.vmem [#allocation2], 14
    %v765 = vld [vmem:[%s764] sm:$0x3]
    %767 = vrot.lane.b32.xlu0 %v763, 32
    %v768 = vpop.permute.xlu0 %767
    %v769 = vsel %vm312, %v768, 0
    %771 = vmatpush.msra.mxu0 0.0
    %772 = vmatpush.msra.mxu0 0.0
    %773 = vmatpush.msra.mxu0 0.0
    %774 = vmatpush.msra.mxu0 0.0
    %775 = vmatpush.msra.mxu0 0.0
    %776 = vmatpush.msra.mxu0 0.0
    %777 = vmatpush.msra.mxu0 0.0
    %778 = vmatpush.msra.mxu0 0.0
    %779 = vmatpush.msra.mxu0 0.0
    %780 = vmatpush.msra.mxu0 0.0
    %781 = vmatpush.msra.mxu0 0.0
    %782 = vmatpush.msra.mxu0 0.0
    %783 = vmatpush.msra.mxu0 %v310
    %784 = vmatpush.msra.mxu0 %v309
    %785 = vmatpush.msra.mxu0 %v308
    %786 = vmatpush.msra.mxu0 %v307
    %787 = vmatmul.f32.gmra.mxu0 %v769
    %v788 = vpop.f32.mrf.mxu0
    %v789 = vadd.f32 0.0, %v788
    %790 = vdwg.mxu0
    %v791 = vadd.f32 %v765, %v789
    %v792 = vxor.u32 %v791, 2147483648
    %v793 = vmul.f32 %v792, 1.442695
    %v794 = vpow.pop %v793
    %v795 = vadd.f32 %v794, 1.0
    %v796 = vrcp.pop %v795
    %v797 = vmul.f32 %v795, %v796
    %v798 = vsub.f32 1.0, %v797
    %v799 = vmul.f32 %v796, %v798
    %v800 = vadd.f32 %v796, %v799
    %vm801 = vweird.f32 %v795
    %vm802 = vweird.f32 %v796
    %vm803 = vmor %vm801, %vm802
    %v804 = vsel %vm803, %v796, %v800
    %v805 = vand.u32 2147483647, %v795
    %vm806 = vcmp.eq.f32.partialorder %v805, 8.507059e+37
    %v807 = vand.u32 %v795, 2147483648
    %v808 = vor.u32 1.1754944e-38, %v807
    %v809 = vsel %vm806, %v808, %v804
    %v810 = vmul.f32 1.0, %v809
    %v811 = vtanh.pop %v791
    %v812 = vmul.f32 %v810, %v757
    %814 = vrot.lane.b32.xlu0 %v811, 64
    %v815 = vpop.permute.xlu0 %814
    %v817 = vmul.f32 %v810, %v815
    %819 = vrot.lane.b32.xlu0 %v817, 32
    %v820 = vpop.permute.xlu0 %819
    %v822 = vadd.f32 %v812, %v820
    %v823 = vtanh.pop %v822
    %825 = vrot.lane.b32.xlu0 %v823, 64
    %v826 = vpop.permute.xlu0 %825
    %v828 = vmul.f32 %v810, %v826
    %v829 = vld [vmem:[#allocation11] sm:$0xff]
    %v830 = vld [vmem:[#allocation11 + $0x8] sm:$0xff]
    %v831 = vld [vmem:[#allocation11 + $0x10] sm:$0xff]
    %v832 = vld [vmem:[#allocation11 + $0x18] sm:$0xff]
    %834 = vrot.lane.b32.xlu0 %v828, 32
    %v835 = vpop.permute.xlu0 %834
    %s837 = scalar_lea.vmem [#allocation4], 14
    %vm838 = vcmask 254976
    %839 = vst.msk [vmem:[%s837] sm:$0x3] %vm838, %v835
    %s840 = scalar_lea.vmem [#allocation3], 14
    %v841 = vld [vmem:[%s840] sm:$0x3]
    %v842 = vsel %vm312, %v835, 0
    %844 = vmatpush.msra.mxu0 0.0
    %845 = vmatpush.msra.mxu0 0.0
    %846 = vmatpush.msra.mxu0 0.0
    %847 = vmatpush.msra.mxu0 0.0
    %848 = vmatpush.msra.mxu0 0.0
    %849 = vmatpush.msra.mxu0 0.0
    %850 = vmatpush.msra.mxu0 0.0
    %851 = vmatpush.msra.mxu0 0.0
    %852 = vmatpush.msra.mxu0 0.0
    %853 = vmatpush.msra.mxu0 0.0
    %854 = vmatpush.msra.mxu0 0.0
    %855 = vmatpush.msra.mxu0 0.0
    %856 = vmatpush.msra.mxu0 %v832
    %857 = vmatpush.msra.mxu0 %v831
    %858 = vmatpush.msra.mxu0 %v830
    %859 = vmatpush.msra.mxu0 %v829
    %860 = vmatmul.f32.gmra.mxu0 %v842
    %v861 = vpop.f32.mrf.mxu0
    %v862 = vadd.f32 0.0, %v861
    %863 = vdwg.mxu0
    %v864 = vadd.f32 %v841, %v862
    %v865 = vxor.u32 %v864, 2147483648
    %v866 = vmul.f32 %v865, 1.442695
    %v867 = vpow.pop %v866
    %v868 = vadd.f32 %v867, 1.0
    %v869 = vrcp.pop %v868
    %v870 = vmul.f32 %v868, %v869
    %v871 = vsub.f32 1.0, %v870
    %v872 = vmul.f32 %v869, %v871
    %v873 = vadd.f32 %v869, %v872
    %vm874 = vweird.f32 %v868
    %vm875 = vweird.f32 %v869
    %vm876 = vmor %vm874, %vm875
    %v877 = vsel %vm876, %v869, %v873
    %v878 = vand.u32 2147483647, %v868
    %vm879 = vcmp.eq.f32.partialorder %v878, 8.507059e+37
    %v880 = vand.u32 %v868, 2147483648
    %v881 = vor.u32 1.1754944e-38, %v880
    %v882 = vsel %vm879, %v881, %v877
    %v883 = vmul.f32 1.0, %v882
    %v884 = vtanh.pop %v864
    %v885 = vmul.f32 %v883, %v822
    %887 = vrot.lane.b32.xlu0 %v884, 64
    %v888 = vpop.permute.xlu0 %887
    %v890 = vmul.f32 %v883, %v888
    %892 = vrot.lane.b32.xlu0 %v890, 32
    %v893 = vpop.permute.xlu0 %892
    %v895 = vadd.f32 %v885, %v893
    %v896 = vtanh.pop %v895
    %898 = vrot.lane.b32.xlu0 %v896, 64
    %v899 = vpop.permute.xlu0 %898
    %v901 = vmul.f32 %v883, %v899
    %903 = vrot.lane.b32.xlu0 %v901, 32
    %v904 = vpop.permute.xlu0 %903
    %s906 = scalar_lea.vmem [#allocation4], 12
    %907 = vst.msk [vmem:[%s906] sm:$0x3] %vm838, %v904
    %s908 = scalar_lea.vmem [#allocation3], 12
    %v909 = vld [vmem:[%s908] sm:$0x3]
    %v910 = vsel %vm312, %v904, 0
    %912 = vmatpush.msra.mxu0 0.0
    %913 = vmatpush.msra.mxu0 0.0
    %914 = vmatpush.msra.mxu0 0.0
    %915 = vmatpush.msra.mxu0 0.0
    %916 = vmatpush.msra.mxu0 0.0
    %917 = vmatpush.msra.mxu0 0.0
    %918 = vmatpush.msra.mxu0 0.0
    %919 = vmatpush.msra.mxu0 0.0
    %920 = vmatpush.msra.mxu0 0.0
    %921 = vmatpush.msra.mxu0 0.0
    %922 = vmatpush.msra.mxu0 0.0
    %923 = vmatpush.msra.mxu0 0.0
    %924 = vmatpush.msra.mxu0 %v832
    %925 = vmatpush.msra.mxu0 %v831
    %926 = vmatpush.msra.mxu0 %v830
    %927 = vmatpush.msra.mxu0 %v829
    %928 = vmatmul.f32.gmra.mxu0 %v910
    %v929 = vpop.f32.mrf.mxu0
    %v930 = vadd.f32 0.0, %v929
    %931 = vdwg.mxu0
    %v932 = vadd.f32 %v909, %v930
    %v933 = vxor.u32 %v932, 2147483648
    %v934 = vmul.f32 %v933, 1.442695
    %v935 = vpow.pop %v934
    %v936 = vadd.f32 %v935, 1.0
    %v937 = vrcp.pop %v936
    %v938 = vmul.f32 %v936, %v937
    %v939 = vsub.f32 1.0, %v938
    %v940 = vmul.f32 %v937, %v939
    %v941 = vadd.f32 %v937, %v940
    %vm942 = vweird.f32 %v936
    %vm943 = vweird.f32 %v937
    %vm944 = vmor %vm942, %vm943
    %v945 = vsel %vm944, %v937, %v941
    %v946 = vand.u32 2147483647, %v936
    %vm947 = vcmp.eq.f32.partialorder %v946, 8.507059e+37
    %v948 = vand.u32 %v936, 2147483648
    %v949 = vor.u32 1.1754944e-38, %v948
    %v950 = vsel %vm947, %v949, %v945
    %v951 = vmul.f32 1.0, %v950
    %v952 = vtanh.pop %v932
    %v953 = vmul.f32 %v951, %v895
    %955 = vrot.lane.b32.xlu0 %v952, 64
    %v956 = vpop.permute.xlu0 %955
    %v958 = vmul.f32 %v951, %v956
    %960 = vrot.lane.b32.xlu0 %v958, 32
    %v961 = vpop.permute.xlu0 %960
    %v963 = vadd.f32 %v953, %v961
    %v964 = vtanh.pop %v963
    %966 = vrot.lane.b32.xlu0 %v964, 64
    %v967 = vpop.permute.xlu0 %966
    %v969 = vmul.f32 %v951, %v967
    %971 = vrot.lane.b32.xlu0 %v969, 32
    %v972 = vpop.permute.xlu0 %971
    %s974 = scalar_lea.vmem [#allocation4], 10
    %975 = vst.msk [vmem:[%s974] sm:$0x3] %vm838, %v972
    %s976 = scalar_lea.vmem [#allocation3], 10
    %v977 = vld [vmem:[%s976] sm:$0x3]
    %v978 = vsel %vm312, %v972, 0
    %980 = vmatpush.msra.mxu0 0.0
    %981 = vmatpush.msra.mxu0 0.0
    %982 = vmatpush.msra.mxu0 0.0
    %983 = vmatpush.msra.mxu0 0.0
    %984 = vmatpush.msra.mxu0 0.0
    %985 = vmatpush.msra.mxu0 0.0
    %986 = vmatpush.msra.mxu0 0.0
    %987 = vmatpush.msra.mxu0 0.0
    %988 = vmatpush.msra.mxu0 0.0
    %989 = vmatpush.msra.mxu0 0.0
    %990 = vmatpush.msra.mxu0 0.0
    %991 = vmatpush.msra.mxu0 0.0
    %992 = vmatpush.msra.mxu0 %v832
    %993 = vmatpush.msra.mxu0 %v831
    %994 = vmatpush.msra.mxu0 %v830
    %995 = vmatpush.msra.mxu0 %v829
    %996 = vmatmul.f32.gmra.mxu0 %v978
    %v997 = vpop.f32.mrf.mxu0
    %v998 = vadd.f32 0.0, %v997
    %999 = vdwg.mxu0
    %v1000 = vadd.f32 %v977, %v998
    %v1001 = vxor.u32 %v1000, 2147483648
    %v1002 = vmul.f32 %v1001, 1.442695
    %v1003 = vpow.pop %v1002
    %v1004 = vadd.f32 %v1003, 1.0
    %v1005 = vrcp.pop %v1004
    %v1006 = vmul.f32 %v1004, %v1005
    %v1007 = vsub.f32 1.0, %v1006
    %v1008 = vmul.f32 %v1005, %v1007
    %v1009 = vadd.f32 %v1005, %v1008
    %vm1010 = vweird.f32 %v1004
    %vm1011 = vweird.f32 %v1005
    %vm1012 = vmor %vm1010, %vm1011
    %v1013 = vsel %vm1012, %v1005, %v1009
    %v1014 = vand.u32 2147483647, %v1004
    %vm1015 = vcmp.eq.f32.partialorder %v1014, 8.507059e+37
    %v1016 = vand.u32 %v1004, 2147483648
    %v1017 = vor.u32 1.1754944e-38, %v1016
    %v1018 = vsel %vm1015, %v1017, %v1013
    %v1019 = vmul.f32 1.0, %v1018
    %v1020 = vtanh.pop %v1000
    %v1021 = vmul.f32 %v1019, %v963
    %1023 = vrot.lane.b32.xlu0 %v1020, 64
    %v1024 = vpop.permute.xlu0 %1023
    %v1026 = vmul.f32 %v1019, %v1024
    %1028 = vrot.lane.b32.xlu0 %v1026, 32
    %v1029 = vpop.permute.xlu0 %1028
    %v1031 = vadd.f32 %v1021, %v1029
    %v1032 = vtanh.pop %v1031
    %1034 = vrot.lane.b32.xlu0 %v1032, 64
    %v1035 = vpop.permute.xlu0 %1034
    %v1037 = vmul.f32 %v1019, %v1035
    %1039 = vrot.lane.b32.xlu0 %v1037, 32
    %v1040 = vpop.permute.xlu0 %1039
    %s1042 = scalar_lea.vmem [#allocation4], 8
    %1043 = vst.msk [vmem:[%s1042] sm:$0x3] %vm838, %v1040
    %s1044 = scalar_lea.vmem [#allocation3], 8
    %v1045 = vld [vmem:[%s1044] sm:$0x3]
    %v1046 = vsel %vm312, %v1040, 0
    %1048 = vmatpush.msra.mxu0 0.0
    %1049 = vmatpush.msra.mxu0 0.0
    %1050 = vmatpush.msra.mxu0 0.0
    %1051 = vmatpush.msra.mxu0 0.0
    %1052 = vmatpush.msra.mxu0 0.0
    %1053 = vmatpush.msra.mxu0 0.0
    %1054 = vmatpush.msra.mxu0 0.0
    %1055 = vmatpush.msra.mxu0 0.0
    %1056 = vmatpush.msra.mxu0 0.0
    %1057 = vmatpush.msra.mxu0 0.0
    %1058 = vmatpush.msra.mxu0 0.0
    %1059 = vmatpush.msra.mxu0 0.0
    %1060 = vmatpush.msra.mxu0 %v832
    %1061 = vmatpush.msra.mxu0 %v831
    %1062 = vmatpush.msra.mxu0 %v830
    %1063 = vmatpush.msra.mxu0 %v829
    %1064 = vmatmul.f32.gmra.mxu0 %v1046
    %v1065 = vpop.f32.mrf.mxu0
    %v1066 = vadd.f32 0.0, %v1065
    %1067 = vdwg.mxu0
    %v1068 = vadd.f32 %v1045, %v1066
    %v1069 = vxor.u32 %v1068, 2147483648
    %v1070 = vmul.f32 %v1069, 1.442695
    %v1071 = vpow.pop %v1070
    %v1072 = vadd.f32 %v1071, 1.0
    %v1073 = vrcp.pop %v1072
    %v1074 = vmul.f32 %v1072, %v1073
    %v1075 = vsub.f32 1.0, %v1074
    %v1076 = vmul.f32 %v1073, %v1075
    %v1077 = vadd.f32 %v1073, %v1076
    %vm1078 = vweird.f32 %v1072
    %vm1079 = vweird.f32 %v1073
    %vm1080 = vmor %vm1078, %vm1079
    %v1081 = vsel %vm1080, %v1073, %v1077
    %v1082 = vand.u32 2147483647, %v1072
    %vm1083 = vcmp.eq.f32.partialorder %v1082, 8.507059e+37
    %v1084 = vand.u32 %v1072, 2147483648
    %v1085 = vor.u32 1.1754944e-38, %v1084
    %v1086 = vsel %vm1083, %v1085, %v1081
    %v1087 = vmul.f32 1.0, %v1086
    %v1088 = vtanh.pop %v1068
    %v1089 = vmul.f32 %v1087, %v1031
    %1091 = vrot.lane.b32.xlu0 %v1088, 64
    %v1092 = vpop.permute.xlu0 %1091
    %v1094 = vmul.f32 %v1087, %v1092
    %1096 = vrot.lane.b32.xlu0 %v1094, 32
    %v1097 = vpop.permute.xlu0 %1096
    %v1099 = vadd.f32 %v1089, %v1097
    %v1100 = vtanh.pop %v1099
    %1102 = vrot.lane.b32.xlu0 %v1100, 64
    %v1103 = vpop.permute.xlu0 %1102
    %v1105 = vmul.f32 %v1087, %v1103
    %1107 = vrot.lane.b32.xlu0 %v1105, 32
    %v1108 = vpop.permute.xlu0 %1107
    %s1110 = scalar_lea.vmem [#allocation4], 6
    %1111 = vst.msk [vmem:[%s1110] sm:$0x3] %vm838, %v1108
    %s1112 = scalar_lea.vmem [#allocation3], 6
    %v1113 = vld [vmem:[%s1112] sm:$0x3]
    %v1114 = vsel %vm312, %v1108, 0
    %1116 = vmatpush.msra.mxu0 0.0
    %1117 = vmatpush.msra.mxu0 0.0
    %1118 = vmatpush.msra.mxu0 0.0
    %1119 = vmatpush.msra.mxu0 0.0
    %1120 = vmatpush.msra.mxu0 0.0
    %1121 = vmatpush.msra.mxu0 0.0
    %1122 = vmatpush.msra.mxu0 0.0
    %1123 = vmatpush.msra.mxu0 0.0
    %1124 = vmatpush.msra.mxu0 0.0
    %1125 = vmatpush.msra.mxu0 0.0
    %1126 = vmatpush.msra.mxu0 0.0
    %1127 = vmatpush.msra.mxu0 0.0
    %1128 = vmatpush.msra.mxu0 %v832
    %1129 = vmatpush.msra.mxu0 %v831
    %1130 = vmatpush.msra.mxu0 %v830
    %1131 = vmatpush.msra.mxu0 %v829
    %1132 = vmatmul.f32.gmra.mxu0 %v1114
    %v1133 = vpop.f32.mrf.mxu0
    %v1134 = vadd.f32 0.0, %v1133
    %1135 = vdwg.mxu0
    %v1136 = vadd.f32 %v1113, %v1134
    %v1137 = vxor.u32 %v1136, 2147483648
    %v1138 = vmul.f32 %v1137, 1.442695
    %v1139 = vpow.pop %v1138
    %v1140 = vadd.f32 %v1139, 1.0
    %v1141 = vrcp.pop %v1140
    %v1142 = vmul.f32 %v1140, %v1141
    %v1143 = vsub.f32 1.0, %v1142
    %v1144 = vmul.f32 %v1141, %v1143
    %v1145 = vadd.f32 %v1141, %v1144
    %vm1146 = vweird.f32 %v1140
    %vm1147 = vweird.f32 %v1141
    %vm1148 = vmor %vm1146, %vm1147
    %v1149 = vsel %vm1148, %v1141, %v1145
    %v1150 = vand.u32 2147483647, %v1140
    %vm1151 = vcmp.eq.f32.partialorder %v1150, 8.507059e+37
    %v1152 = vand.u32 %v1140, 2147483648
    %v1153 = vor.u32 1.1754944e-38, %v1152
    %v1154 = vsel %vm1151, %v1153, %v1149
    %v1155 = vmul.f32 1.0, %v1154
    %v1156 = vtanh.pop %v1136
    %v1157 = vmul.f32 %v1155, %v1099
    %1159 = vrot.lane.b32.xlu0 %v1156, 64
    %v1160 = vpop.permute.xlu0 %1159
    %v1162 = vmul.f32 %v1155, %v1160
    %1164 = vrot.lane.b32.xlu0 %v1162, 32
    %v1165 = vpop.permute.xlu0 %1164
    %v1167 = vadd.f32 %v1157, %v1165
    %v1168 = vtanh.pop %v1167
    %1170 = vrot.lane.b32.xlu0 %v1168, 64
    %v1171 = vpop.permute.xlu0 %1170
    %v1173 = vmul.f32 %v1155, %v1171
    %1175 = vrot.lane.b32.xlu0 %v1173, 32
    %v1176 = vpop.permute.xlu0 %1175
    %s1178 = scalar_lea.vmem [#allocation4], 4
    %1179 = vst.msk [vmem:[%s1178] sm:$0x3] %vm838, %v1176
    %s1180 = scalar_lea.vmem [#allocation3], 4
    %v1181 = vld [vmem:[%s1180] sm:$0x3]
    %v1182 = vsel %vm312, %v1176, 0
    %1184 = vmatpush.msra.mxu0 0.0
    %1185 = vmatpush.msra.mxu0 0.0
    %1186 = vmatpush.msra.mxu0 0.0
    %1187 = vmatpush.msra.mxu0 0.0
    %1188 = vmatpush.msra.mxu0 0.0
    %1189 = vmatpush.msra.mxu0 0.0
    %1190 = vmatpush.msra.mxu0 0.0
    %1191 = vmatpush.msra.mxu0 0.0
    %1192 = vmatpush.msra.mxu0 0.0
    %1193 = vmatpush.msra.mxu0 0.0
    %1194 = vmatpush.msra.mxu0 0.0
    %1195 = vmatpush.msra.mxu0 0.0
    %1196 = vmatpush.msra.mxu0 %v832
    %1197 = vmatpush.msra.mxu0 %v831
    %1198 = vmatpush.msra.mxu0 %v830
    %1199 = vmatpush.msra.mxu0 %v829
    %1200 = vmatmul.f32.gmra.mxu0 %v1182
    %v1201 = vpop.f32.mrf.mxu0
    %v1202 = vadd.f32 0.0, %v1201
    %1203 = vdwg.mxu0
    %v1204 = vadd.f32 %v1181, %v1202
    %v1205 = vxor.u32 %v1204, 2147483648
    %v1206 = vmul.f32 %v1205, 1.442695
    %v1207 = vpow.pop %v1206
    %v1208 = vadd.f32 %v1207, 1.0
    %v1209 = vrcp.pop %v1208
    %v1210 = vmul.f32 %v1208, %v1209
    %v1211 = vsub.f32 1.0, %v1210
    %v1212 = vmul.f32 %v1209, %v1211
    %v1213 = vadd.f32 %v1209, %v1212
    %vm1214 = vweird.f32 %v1208
    %vm1215 = vweird.f32 %v1209
    %vm1216 = vmor %vm1214, %vm1215
    %v1217 = vsel %vm1216, %v1209, %v1213
    %v1218 = vand.u32 2147483647, %v1208
    %vm1219 = vcmp.eq.f32.partialorder %v1218, 8.507059e+37
    %v1220 = vand.u32 %v1208, 2147483648
    %v1221 = vor.u32 1.1754944e-38, %v1220
    %v1222 = vsel %vm1219, %v1221, %v1217
    %v1223 = vmul.f32 1.0, %v1222
    %v1224 = vtanh.pop %v1204
    %v1225 = vmul.f32 %v1223, %v1167
    %1227 = vrot.lane.b32.xlu0 %v1224, 64
    %v1228 = vpop.permute.xlu0 %1227
    %v1230 = vmul.f32 %v1223, %v1228
    %1232 = vrot.lane.b32.xlu0 %v1230, 32
    %v1233 = vpop.permute.xlu0 %1232
    %v1235 = vadd.f32 %v1225, %v1233
    %v1236 = vtanh.pop %v1235
    %1238 = vrot.lane.b32.xlu0 %v1236, 64
    %v1239 = vpop.permute.xlu0 %1238
    %v1241 = vmul.f32 %v1223, %v1239
    %1243 = vrot.lane.b32.xlu0 %v1241, 32
    %v1244 = vpop.permute.xlu0 %1243
    %s1246 = scalar_lea.vmem [#allocation4], 2
    %1247 = vst.msk [vmem:[%s1246] sm:$0x3] %vm838, %v1244
    %s1248 = scalar_lea.vmem [#allocation3], 2
    %v1249 = vld [vmem:[%s1248] sm:$0x3]
    %v1250 = vsel %vm312, %v1244, 0
    %1252 = vmatpush.msra.mxu0 0.0
    %1253 = vmatpush.msra.mxu0 0.0
    %1254 = vmatpush.msra.mxu0 0.0
    %1255 = vmatpush.msra.mxu0 0.0
    %1256 = vmatpush.msra.mxu0 0.0
    %1257 = vmatpush.msra.mxu0 0.0
    %1258 = vmatpush.msra.mxu0 0.0
    %1259 = vmatpush.msra.mxu0 0.0
    %1260 = vmatpush.msra.mxu0 0.0
    %1261 = vmatpush.msra.mxu0 0.0
    %1262 = vmatpush.msra.mxu0 0.0
    %1263 = vmatpush.msra.mxu0 0.0
    %1264 = vmatpush.msra.mxu0 %v832
    %1265 = vmatpush.msra.mxu0 %v831
    %1266 = vmatpush.msra.mxu0 %v830
    %1267 = vmatpush.msra.mxu0 %v829
    %1268 = vmatmul.f32.gmra.mxu0 %v1250
    %v1269 = vpop.f32.mrf.mxu0
    %v1270 = vadd.f32 0.0, %v1269
    %1271 = vdwg.mxu0
    %v1272 = vadd.f32 %v1249, %v1270
    %v1273 = vxor.u32 %v1272, 2147483648
    %v1274 = vmul.f32 %v1273, 1.442695
    %v1275 = vpow.pop %v1274
    %v1276 = vadd.f32 %v1275, 1.0
    %v1277 = vrcp.pop %v1276
    %v1278 = vmul.f32 %v1276, %v1277
    %v1279 = vsub.f32 1.0, %v1278
    %v1280 = vmul.f32 %v1277, %v1279
    %v1281 = vadd.f32 %v1277, %v1280
    %vm1282 = vweird.f32 %v1276
    %vm1283 = vweird.f32 %v1277
    %vm1284 = vmor %vm1282, %vm1283
    %v1285 = vsel %vm1284, %v1277, %v1281
    %v1286 = vand.u32 2147483647, %v1276
    %vm1287 = vcmp.eq.f32.partialorder %v1286, 8.507059e+37
    %v1288 = vand.u32 %v1276, 2147483648
    %v1289 = vor.u32 1.1754944e-38, %v1288
    %v1290 = vsel %vm1287, %v1289, %v1285
    %v1291 = vmul.f32 1.0, %v1290
    %v1292 = vtanh.pop %v1272
    %v1293 = vmul.f32 %v1291, %v1235
    %1295 = vrot.lane.b32.xlu0 %v1292, 64
    %v1296 = vpop.permute.xlu0 %1295
    %v1298 = vmul.f32 %v1291, %v1296
    %1300 = vrot.lane.b32.xlu0 %v1298, 32
    %v1301 = vpop.permute.xlu0 %1300
    %v1303 = vadd.f32 %v1293, %v1301
    %v1304 = vtanh.pop %v1303
    %1306 = vrot.lane.b32.xlu0 %v1304, 64
    %v1307 = vpop.permute.xlu0 %1306
    %v1309 = vmul.f32 %v1291, %v1307
    %1311 = vrot.lane.b32.xlu0 %v1309, 32
    %v1312 = vpop.permute.xlu0 %1311
    %1314 = vst.msk [vmem:[#allocation4] sm:$0x3] %vm838, %v1312
    %v1315 = vld [vmem:[%s11] sm:$0xff]
    %v1316 = vld [vmem:[%s11 + $0x8] sm:$0xff]
    %v1317 = vld [vmem:[%s11 + $0x10] sm:$0xff]
    %v1318 = vld [vmem:[%s11 + $0x18] sm:$0xff]
    %v1319 = vld [vmem:[%s12] sm:$0x1]
    %v1320 = vld [vmem:[#allocation4] sm:$0x3]
    %v1321 = vld [vmem:[#allocation4 + $0x2] sm:$0x3]
    %v1322 = vld [vmem:[#allocation4 + $0x4] sm:$0x3]
    %v1323 = vld [vmem:[#allocation4 + $0x6] sm:$0x3]
    %v1324 = vld [vmem:[#allocation4 + $0x8] sm:$0x3]
    %v1325 = vld [vmem:[#allocation4 + $0xa] sm:$0x3]
    %v1326 = vld [vmem:[#allocation4 + $0xc] sm:$0x3]
    %v1327 = vld [vmem:[#allocation4 + $0xe] sm:$0x3]
    %v1329 = vperm.slane %v1319, 0
    %1339 = vst [vmem:[#allocation1] ss:$4 sm:$0xff] %v1320
    %s1340 = scalar_lea.vmem [#allocation1], 1
    %1341 = vst [vmem:[%s1340] ss:$4 sm:$0xff] %v1321
    %s1342 = scalar_lea.vmem [#allocation1], 2
    %1343 = vst [vmem:[%s1342] ss:$4 sm:$0xff] %v1322
    %s1344 = scalar_lea.vmem [#allocation1], 3
    %1345 = vst [vmem:[%s1344] ss:$4 sm:$0xff] %v1323
    %s1346 = scalar_lea.vmem [#allocation1], 32
    %1347 = vst [vmem:[%s1346] ss:$4 sm:$0xff] %v1324
    %s1348 = scalar_lea.vmem [#allocation1], 33
    %1349 = vst [vmem:[%s1348] ss:$4 sm:$0xff] %v1325
    %s1350 = scalar_lea.vmem [#allocation1], 34
    %1351 = vst [vmem:[%s1350] ss:$4 sm:$0xff] %v1326
    %s1352 = scalar_lea.vmem [#allocation1], 35
    %1353 = vst [vmem:[%s1352] ss:$4 sm:$0xff] %v1327
    %v1354 = vld.sshfl [vmem:[#allocation1] sm:$0xff pattern:$0x73625140]
    %v1355 = vld.sshfl [vmem:[#allocation1 + $0x20] sm:$0xff pattern:$0x73625140]
    %v1356 = vsel %vm312, %v1354, 0
    %v1358 = vsel %vm312, %v1355, 0
    %1360 = vmatpush.msra.mxu0 0.0
    %1361 = vmatpush.msra.mxu0 0.0
    %1362 = vmatpush.msra.mxu0 0.0
    %1363 = vmatpush.msra.mxu0 0.0
    %1364 = vmatpush.msra.mxu0 0.0
    %1365 = vmatpush.msra.mxu0 0.0
    %1366 = vmatpush.msra.mxu0 0.0
    %1367 = vmatpush.msra.mxu0 0.0
    %1368 = vmatpush.msra.mxu0 0.0
    %1369 = vmatpush.msra.mxu0 0.0
    %1370 = vmatpush.msra.mxu0 0.0
    %1371 = vmatpush.msra.mxu0 0.0
    %1372 = vmatpush.msra.mxu0 %v1318
    %1373 = vmatpush.msra.mxu0 %v1317
    %1374 = vmatpush.msra.mxu0 %v1316
    %1375 = vmatpush.msra.mxu0 %v1315
    %1376 = vmatmul.f32.gmra.mxu0 %v1356
    %v1377 = vpop.f32.mrf.mxu0
    %v1378 = vadd.f32 %v1329, %v1377
    %1379 = vmatmul.f32.gmra.mxu0 %v1358
    %v1380 = vpop.f32.mrf.mxu0
    %v1381 = vadd.f32 %v1329, %v1380
    %1382 = vdwg.mxu0
    %v1385 = vrot.slane %v1378, 2
    %v1386 = vrot.slane %v1378, 4
    %v1387 = vrot.slane %v1378, 6
    %v1388 = vrot.slane %v1381, 2
    %v1389 = vrot.slane %v1381, 4
    %v1390 = vrot.slane %v1381, 6
    %vm1397 = vcmask 58368
    %1398 = vst.msk [vmem:[#allocation17] sm:$0x3] %vm1397, %v1378
    %1399 = vst.msk [vmem:[#allocation17 + $0x2] sm:$0x3] %vm1397, %v1385
    %1400 = vst.msk [vmem:[#allocation17 + $0x4] sm:$0x3] %vm1397, %v1386
    %1401 = vst.msk [vmem:[#allocation17 + $0x6] sm:$0x3] %vm1397, %v1387
    %1402 = vst.msk [vmem:[#allocation17 + $0x8] sm:$0x3] %vm1397, %v1381
    %1403 = vst.msk [vmem:[#allocation17 + $0xa] sm:$0x3] %vm1397, %v1388
    %1404 = vst.msk [vmem:[#allocation17 + $0xc] sm:$0x3] %vm1397, %v1389
    %1405 = vst.msk [vmem:[#allocation17 + $0xe] sm:$0x3] %vm1397, %v1390
    // Predicated region
    $region82: #{tpu_custom_call.1} parent=1 // pred_check
      _
    $region83: #{tpu_custom_call.1} parent=1 // pred_check_branch
      %1407 = sbr.rel (0) target = $region85
    $region84: #{tpu_custom_call.1} parent=1 // pred_region
      %1409 = vsyncadd [#allocation7], 0
      %s1410 = sshll.u32 [#allocation17], 4
      %s1411 = int_to_ptr.vmem [resolvable:$true] %s1410
      %s1412 = sshll.u32 %s13, 4
      %s1413 = int_to_ptr.hbm [resolvable:$true] %s1412
      %1418 = dma.vmem_to_hbm [thread:$0]  %s1411, 256, %s1413, [#allocation7], 32, 32, 2
    $region85: #{tpu_custom_call.1} parent=1 // pred_fallthru
      _
    // Predicated region
    $region86: #{tpu_custom_call.1} parent=1 // pred_check
      _
    $region87: #{tpu_custom_call.1} parent=1 // pred_check_branch
      %1420 = sbr.rel (0) target = $region89
    $region88: #{tpu_custom_call.1} parent=1 // pred_region
      %1422 = dma.done [#allocation7], 256
    $region89: #{tpu_custom_call.1} parent=1 // pred_fallthru
      _
    %1423 = vsyncpa [#allocation6], 1
    %1424 = vsyncpa [#allocation9], 1
    %1425 = vsyncpa [#allocation12], 1
    %1426 = vsyncpa [#allocation15], 1
    %1427 = vsyncpa [#allocation7], 1

</llo_original>
